<compile_context>
chip_gen: v5e
topology: v5e:2x2
jax: 0.10.0
libtpu: 0.0.40
codegen_flags: <defaults>
</compile_context>

<pallas_src>
import jax
import jax.numpy as jnp
from jax import lax
from jax.experimental import pallas as pl
from jax.experimental.pallas import tpu as pltpu


# ----------------------------------------------------------------------------
# Fused autoencoder kernel: encoder recurrence -> decoder recurrence, one call.
# Gate ordering follows PyTorch nn.LSTM: [i, f, g, o]; bias is fused b_ih + b_hh.
# ----------------------------------------------------------------------------
def lstm_autoencoder_kernel(x_ref, ewih_ref, ewhh_ref, eb_ref,
                            dwih_ref, dwhh_ref, db_ref, y_ref):
    T, Bp, Din = x_ref.shape
    H = ewhh_ref.shape[0]

    def gate_math(gates, c_prev, n):
        # Two full-width EUP launches over the whole 4n-lane gate tile instead of four
        # lane-sliced launches; the lane slicing happens after the activations.
        sig = jax.nn.sigmoid(gates)
        th = jnp.tanh(gates)
        i = sig[:, 0 * n:1 * n]
        f = sig[:, 1 * n:2 * n]
        g = th[:, 2 * n:3 * n]
        o = sig[:, 3 * n:4 * n]
        c_new = f * c_prev + i * g
        h_new = o * jnp.tanh(c_new)
        return h_new, c_new

    # ---- encoder: hoisted input projection (one tall MXU matmul covers all T steps) --
    x_flat = x_ref[...].reshape(T * Bp, Din)                 # leading-dim collapse: free
    xproj = (jnp.dot(x_flat, ewih_ref[...], preferred_element_type=jnp.float32)
             + eb_ref[...])                                  # (T*Bp, 4H)

    # ---- encoder recurrence (only the final hidden state is consumed) ----------------
    h = jnp.zeros((Bp, H), jnp.float32)
    c = jnp.zeros((Bp, H), jnp.float32)
    for t in range(T):                                       # fully unrolled, static
        gates = xproj[t * Bp:(t + 1) * Bp, :] + jnp.dot(
            h, ewhh_ref[...], preferred_element_type=jnp.float32)
        h, c = gate_math(gates, c, H)
    # h: (Bp, H) final encoder hidden state, stays in vregs/VMEM.

    # ---- decoder: input is constant over time -> project it exactly once -------------
    dec_in = (jnp.dot(h, dwih_ref[...], preferred_element_type=jnp.float32)
              + db_ref[...])                                 # (Bp, 4*Din)

    hd = jnp.zeros((Bp, Din), jnp.float32)
    cd = jnp.zeros((Bp, Din), jnp.float32)
    hs = []
    for t in range(T):                                       # fully unrolled, static
        gates = dec_in + jnp.dot(hd, dwhh_ref[...],
                                 preferred_element_type=jnp.float32)
        hd, cd = gate_math(gates, cd, Din)
        hs.append(hd)

    # ---- lane-dense output: one (Bp, T*Din) = (8, 128) slab, single unmasked store ----
    y_ref[...] = jnp.concatenate(hs, axis=-1).astype(y_ref.dtype)


# ----------------------------------------------------------------------------
# Wrapper: batch-first API like the PyTorch module, single fused pallas_call.
# ----------------------------------------------------------------------------
def lstm_autoencoder_forward(x_btd, enc_params, dec_params):
    """x_btd: (B, T, input_dim) batch-first. Returns (B, T, input_dim)."""
    B, T, Din = x_btd.shape
    ewih, ewhh, eb = enc_params
    dwih, dwhh, db = dec_params
    H = ewhh.shape[0]
    assert ewih.shape == (Din, 4 * H) and eb.shape == (1, 4 * H)
    assert dwih.shape == (H, 4 * Din) and dwhh.shape == (Din, 4 * Din)

    Bp = ((B + 7) // 8) * 8                                  # pad sublane axis to 8
    x_tbd = jnp.transpose(x_btd, (1, 0, 2))                  # time-major, once
    if Bp != B:
        x_tbd = jnp.pad(x_tbd, ((0, 0), (0, Bp - B), (0, 0)))

    grid_spec = pltpu.PrefetchScalarGridSpec(
        num_scalar_prefetch=0,
        grid=(1,),                                           # whole problem, one step
        in_specs=[
            pl.BlockSpec((T, Bp, Din), lambda i: (0, 0, 0)),     # x (time-major, padded)
            pl.BlockSpec((Din, 4 * H), lambda i: (0, 0)),        # enc W_ih
            pl.BlockSpec((H, 4 * H), lambda i: (0, 0)),          # enc W_hh
            pl.BlockSpec((1, 4 * H), lambda i: (0, 0)),          # enc bias (b_ih+b_hh)
            pl.BlockSpec((H, 4 * Din), lambda i: (0, 0)),        # dec W_ih
            pl.BlockSpec((Din, 4 * Din), lambda i: (0, 0)),      # dec W_hh
            pl.BlockSpec((1, 4 * Din), lambda i: (0, 0)),        # dec bias
        ],
        out_specs=pl.BlockSpec((Bp, T * Din), lambda i: (0, 0)),  # lane-dense (8,128)
    )

    y = pl.pallas_call(
        lstm_autoencoder_kernel,
        out_shape=jax.ShapeDtypeStruct((Bp, T * Din), jnp.float32),
        grid_spec=grid_spec,
        compiler_params=pltpu.CompilerParams(
            dimension_semantics=("arbitrary",),
            vmem_limit_bytes=32 * 1024 * 1024),              # explicit budget (~60 KiB used)
    )(x_tbd, ewih, ewhh, eb, dwih, dwhh, db)

    # Output is already batch-major: slice batch padding, unflatten time. No transpose.
    return y[:B].reshape(B, T, Din)


# ----------------------------------------------------------------------------
# Deterministic parameter construction (PyTorch-style init, pre-transposed).
# ----------------------------------------------------------------------------
def init_lstm_params(key, in_dim, hidden_dim):
    k1, k2, k3, k4 = jax.random.split(key, 4)
    bound = 1.0 / jnp.sqrt(jnp.float32(hidden_dim))
    w_ih = jax.random.uniform(k1, (in_dim, 4 * hidden_dim), jnp.float32, -bound, bound)
    w_hh = jax.random.uniform(k2, (hidden_dim, 4 * hidden_dim), jnp.float32, -bound, bound)
    b_ih = jax.random.uniform(k3, (4 * hidden_dim,), jnp.float32, -bound, bound)
    b_hh = jax.random.uniform(k4, (4 * hidden_dim,), jnp.float32, -bound, bound)
    bias = (b_ih + b_hh).reshape(1, 4 * hidden_dim)
    return w_ih, w_hh, bias


# ----------------------------------------------------------------------------
# Pure-JAX reference (lax.scan) for correctness checking.
# ----------------------------------------------------------------------------
def lstm_ref(x_btd, w_ih, w_hh, bias):
    B, T, D = x_btd.shape
    H = w_hh.shape[0]

    def step(carry, x_t):
        h, c = carry
        gates = x_t @ w_ih + h @ w_hh + bias[0]
        i = jax.nn.sigmoid(gates[:, 0 * H:1 * H])
        f = jax.nn.sigmoid(gates[:, 1 * H:2 * H])
        g = jnp.tanh(gates[:, 2 * H:3 * H])
        o = jax.nn.sigmoid(gates[:, 3 * H:4 * H])
        c = f * c + i * g
        h = o * jnp.tanh(c)
        return (h, c), h

    init = (jnp.zeros((B, H), jnp.float32), jnp.zeros((B, H), jnp.float32))
    (_, _), hs = lax.scan(step, init, jnp.transpose(x_btd, (1, 0, 2)))
    return jnp.transpose(hs, (1, 0, 2))                      # (B, T, H)


def autoencoder_ref(x_btd, enc_params, dec_params):
    B, T, D = x_btd.shape
    h_final = lstm_ref(x_btd, *enc_params)[:, -1, :]         # (B, H)
    dec_in = jnp.broadcast_to(h_final[:, None, :], (B, T, h_final.shape[-1]))
    return lstm_ref(dec_in, *dec_params)                     # (B, T, D)


# ----------------------------------------------------------------------------
if __name__ == "__main__":
    B, T, INPUT_DIM, HIDDEN_DIM = 2, 8, 16, 32

    key = jax.random.PRNGKey(0)
    kx, kenc, kdec = jax.random.split(key, 3)

    x = jax.random.normal(kx, (B, T, INPUT_DIM), jnp.float32)

    # encoder: LSTM(input_dim -> hidden_dim); decoder: LSTM(hidden_dim -> input_dim)
    enc_params = init_lstm_params(kenc, INPUT_DIM, HIDDEN_DIM)
    dec_params = init_lstm_params(kdec, HIDDEN_DIM, INPUT_DIM)

    decoded = lstm_autoencoder_forward(x, enc_params, dec_params)
    decoded = jax.block_until_ready(decoded)
    assert decoded.shape == (B, T, INPUT_DIM), decoded.shape

    ref = autoencoder_ref(x, enc_params, dec_params)
    max_err = float(jnp.max(jnp.abs(decoded - ref)))
    assert jnp.allclose(decoded, ref, atol=1e-5, rtol=1e-5), max_err

    print("KERNEL_OK")
</pallas_src>

<mosaic_0001>
module attributes {stable_mosaic.version = 11 : i64} {
  func.func @lstm_autoencoder_kernel(%arg0: i32, %arg1: memref<8x8x16xf32, #tpu.memory_space<vmem>>, %arg2: memref<16x128xf32, #tpu.memory_space<vmem>>, %arg3: memref<32x128xf32, #tpu.memory_space<vmem>>, %arg4: memref<1x128xf32, #tpu.memory_space<vmem>>, %arg5: memref<32x64xf32, #tpu.memory_space<vmem>>, %arg6: memref<16x64xf32, #tpu.memory_space<vmem>>, %arg7: memref<1x64xf32, #tpu.memory_space<vmem>>, %arg8: memref<8x128xf32, #tpu.memory_space<vmem>>) attributes {dimension_semantics = [#tpu.dimension_semantics<arbitrary>], iteration_bounds = array<i64: 1>, scalar_prefetch = 0 : i64, scratch_operands = 0 : i64, tpu.core_type = #tpu.core_type<tc>, window_params = [{pipeline_mode = #tpu.pipeline_mode<synchronous>, transform_indices = @transform_0, window_bounds = array<i64: 8, 8, 16>}, {pipeline_mode = #tpu.pipeline_mode<synchronous>, transform_indices = @transform_1, window_bounds = array<i64: 16, 128>}, {pipeline_mode = #tpu.pipeline_mode<synchronous>, transform_indices = @transform_2, window_bounds = array<i64: 32, 128>}, {pipeline_mode = #tpu.pipeline_mode<synchronous>, transform_indices = @transform_3, window_bounds = array<i64: 1, 128>}, {pipeline_mode = #tpu.pipeline_mode<synchronous>, transform_indices = @transform_4, window_bounds = array<i64: 32, 64>}, {pipeline_mode = #tpu.pipeline_mode<synchronous>, transform_indices = @transform_5, window_bounds = array<i64: 16, 64>}, {pipeline_mode = #tpu.pipeline_mode<synchronous>, transform_indices = @transform_6, window_bounds = array<i64: 1, 64>}, {pipeline_mode = #tpu.pipeline_mode<synchronous>, transform_indices = @transform_7, window_bounds = array<i64: 8, 128>}]} {
    %c0 = arith.constant 0 : index
    %c0_0 = arith.constant 0 : index
    %c0_1 = arith.constant 0 : index
    %0 = vector.load %arg1[%c0, %c0_0, %c0_1] : memref<8x8x16xf32, #tpu.memory_space<vmem>>, vector<8x8x16xf32>
    %1 = vector.shape_cast %0 : vector<8x8x16xf32> to vector<64x16xf32>
    %c0_2 = arith.constant 0 : index
    %c0_3 = arith.constant 0 : index
    %2 = vector.load %arg2[%c0_2, %c0_3] : memref<16x128xf32, #tpu.memory_space<vmem>>, vector<16x128xf32>
    %cst = arith.constant dense<0.000000e+00> : vector<64x128xf32>
    %3 = tpu.matmul %1, %2, %cst {dimension_numbers = #tpu.dot_dimension_numbers<[1], [0], [0], [1], [0, 0, 1, 1], [], []>} : vector<64x16xf32>, vector<16x128xf32>, vector<64x128xf32> -> vector<64x128xf32>
    %c0_4 = arith.constant 0 : index
    %c0_5 = arith.constant 0 : index
    %4 = vector.load %arg4[%c0_4, %c0_5] : memref<1x128xf32, #tpu.memory_space<vmem>>, vector<1x128xf32>
    %5 = vector.broadcast %4 : vector<1x128xf32> to vector<64x128xf32>
    %6 = arith.addf %3, %5 : vector<64x128xf32>
    %cst_6 = arith.constant 0.000000e+00 : f32
    %7 = vector.broadcast %cst_6 : f32 to vector<8x32xf32>
    %cst_7 = arith.constant 0.000000e+00 : f32
    %8 = vector.broadcast %cst_7 : f32 to vector<8x32xf32>
    %9 = vector.extract_strided_slice %6 {offsets = [0, 0], sizes = [8, 128], strides = [1, 1]} : vector<64x128xf32> to vector<8x128xf32>
    %c0_8 = arith.constant 0 : index
    %c0_9 = arith.constant 0 : index
    %10 = vector.load %arg3[%c0_8, %c0_9] : memref<32x128xf32, #tpu.memory_space<vmem>>, vector<32x128xf32>
    %cst_10 = arith.constant dense<0.000000e+00> : vector<8x128xf32>
    %11 = tpu.matmul %7, %10, %cst_10 {dimension_numbers = #tpu.dot_dimension_numbers<[1], [0], [0], [1], [0, 0, 1, 1], [], []>} : vector<8x32xf32>, vector<32x128xf32>, vector<8x128xf32> -> vector<8x128xf32>
    %12 = arith.addf %9, %11 : vector<8x128xf32>
    %13 = arith.negf %12 : vector<8x128xf32>
    %14 = math.exp %13 : vector<8x128xf32>
    %cst_11 = arith.constant 1.000000e+00 : f32
    %15 = vector.broadcast %cst_11 : f32 to vector<8x128xf32>
    %16 = arith.addf %15, %14 : vector<8x128xf32>
    %17 = arith.divf %15, %16 : vector<8x128xf32>
    %18 = math.tanh %12 : vector<8x128xf32>
    %19 = vector.extract_strided_slice %17 {offsets = [0, 0], sizes = [8, 32], strides = [1, 1]} : vector<8x128xf32> to vector<8x32xf32>
    %20 = vector.extract_strided_slice %17 {offsets = [0, 32], sizes = [8, 32], strides = [1, 1]} : vector<8x128xf32> to vector<8x32xf32>
    %21 = vector.extract_strided_slice %18 {offsets = [0, 64], sizes = [8, 32], strides = [1, 1]} : vector<8x128xf32> to vector<8x32xf32>
    %22 = vector.extract_strided_slice %17 {offsets = [0, 96], sizes = [8, 32], strides = [1, 1]} : vector<8x128xf32> to vector<8x32xf32>
    %23 = arith.mulf %20, %8 : vector<8x32xf32>
    %24 = arith.mulf %19, %21 : vector<8x32xf32>
    %25 = arith.addf %23, %24 : vector<8x32xf32>
    %26 = math.tanh %25 : vector<8x32xf32>
    %27 = arith.mulf %22, %26 : vector<8x32xf32>
    %28 = vector.extract_strided_slice %6 {offsets = [8, 0], sizes = [8, 128], strides = [1, 1]} : vector<64x128xf32> to vector<8x128xf32>
    %c0_12 = arith.constant 0 : index
    %c0_13 = arith.constant 0 : index
    %29 = vector.load %arg3[%c0_12, %c0_13] : memref<32x128xf32, #tpu.memory_space<vmem>>, vector<32x128xf32>
    %cst_14 = arith.constant dense<0.000000e+00> : vector<8x128xf32>
    %30 = tpu.matmul %27, %29, %cst_14 {dimension_numbers = #tpu.dot_dimension_numbers<[1], [0], [0], [1], [0, 0, 1, 1], [], []>} : vector<8x32xf32>, vector<32x128xf32>, vector<8x128xf32> -> vector<8x128xf32>
    %31 = arith.addf %28, %30 : vector<8x128xf32>
    %32 = arith.negf %31 : vector<8x128xf32>
    %33 = math.exp %32 : vector<8x128xf32>
    %cst_15 = arith.constant 1.000000e+00 : f32
    %34 = vector.broadcast %cst_15 : f32 to vector<8x128xf32>
    %35 = arith.addf %34, %33 : vector<8x128xf32>
    %36 = arith.divf %34, %35 : vector<8x128xf32>
    %37 = math.tanh %31 : vector<8x128xf32>
    %38 = vector.extract_strided_slice %36 {offsets = [0, 0], sizes = [8, 32], strides = [1, 1]} : vector<8x128xf32> to vector<8x32xf32>
    %39 = vector.extract_strided_slice %36 {offsets = [0, 32], sizes = [8, 32], strides = [1, 1]} : vector<8x128xf32> to vector<8x32xf32>
    %40 = vector.extract_strided_slice %37 {offsets = [0, 64], sizes = [8, 32], strides = [1, 1]} : vector<8x128xf32> to vector<8x32xf32>
    %41 = vector.extract_strided_slice %36 {offsets = [0, 96], sizes = [8, 32], strides = [1, 1]} : vector<8x128xf32> to vector<8x32xf32>
    %42 = arith.mulf %39, %25 : vector<8x32xf32>
    %43 = arith.mulf %38, %40 : vector<8x32xf32>
    %44 = arith.addf %42, %43 : vector<8x32xf32>
    %45 = math.tanh %44 : vector<8x32xf32>
    %46 = arith.mulf %41, %45 : vector<8x32xf32>
    %47 = vector.extract_strided_slice %6 {offsets = [16, 0], sizes = [8, 128], strides = [1, 1]} : vector<64x128xf32> to vector<8x128xf32>
    %c0_16 = arith.constant 0 : index
    %c0_17 = arith.constant 0 : index
    %48 = vector.load %arg3[%c0_16, %c0_17] : memref<32x128xf32, #tpu.memory_space<vmem>>, vector<32x128xf32>
    %cst_18 = arith.constant dense<0.000000e+00> : vector<8x128xf32>
    %49 = tpu.matmul %46, %48, %cst_18 {dimension_numbers = #tpu.dot_dimension_numbers<[1], [0], [0], [1], [0, 0, 1, 1], [], []>} : vector<8x32xf32>, vector<32x128xf32>, vector<8x128xf32> -> vector<8x128xf32>
    %50 = arith.addf %47, %49 : vector<8x128xf32>
    %51 = arith.negf %50 : vector<8x128xf32>
    %52 = math.exp %51 : vector<8x128xf32>
    %cst_19 = arith.constant 1.000000e+00 : f32
    %53 = vector.broadcast %cst_19 : f32 to vector<8x128xf32>
    %54 = arith.addf %53, %52 : vector<8x128xf32>
    %55 = arith.divf %53, %54 : vector<8x128xf32>
    %56 = math.tanh %50 : vector<8x128xf32>
    %57 = vector.extract_strided_slice %55 {offsets = [0, 0], sizes = [8, 32], strides = [1, 1]} : vector<8x128xf32> to vector<8x32xf32>
    %58 = vector.extract_strided_slice %55 {offsets = [0, 32], sizes = [8, 32], strides = [1, 1]} : vector<8x128xf32> to vector<8x32xf32>
    %59 = vector.extract_strided_slice %56 {offsets = [0, 64], sizes = [8, 32], strides = [1, 1]} : vector<8x128xf32> to vector<8x32xf32>
    %60 = vector.extract_strided_slice %55 {offsets = [0, 96], sizes = [8, 32], strides = [1, 1]} : vector<8x128xf32> to vector<8x32xf32>
    %61 = arith.mulf %58, %44 : vector<8x32xf32>
    %62 = arith.mulf %57, %59 : vector<8x32xf32>
    %63 = arith.addf %61, %62 : vector<8x32xf32>
    %64 = math.tanh %63 : vector<8x32xf32>
    %65 = arith.mulf %60, %64 : vector<8x32xf32>
    %66 = vector.extract_strided_slice %6 {offsets = [24, 0], sizes = [8, 128], strides = [1, 1]} : vector<64x128xf32> to vector<8x128xf32>
    %c0_20 = arith.constant 0 : index
    %c0_21 = arith.constant 0 : index
    %67 = vector.load %arg3[%c0_20, %c0_21] : memref<32x128xf32, #tpu.memory_space<vmem>>, vector<32x128xf32>
    %cst_22 = arith.constant dense<0.000000e+00> : vector<8x128xf32>
    %68 = tpu.matmul %65, %67, %cst_22 {dimension_numbers = #tpu.dot_dimension_numbers<[1], [0], [0], [1], [0, 0, 1, 1], [], []>} : vector<8x32xf32>, vector<32x128xf32>, vector<8x128xf32> -> vector<8x128xf32>
    %69 = arith.addf %66, %68 : vector<8x128xf32>
    %70 = arith.negf %69 : vector<8x128xf32>
    %71 = math.exp %70 : vector<8x128xf32>
    %cst_23 = arith.constant 1.000000e+00 : f32
    %72 = vector.broadcast %cst_23 : f32 to vector<8x128xf32>
    %73 = arith.addf %72, %71 : vector<8x128xf32>
    %74 = arith.divf %72, %73 : vector<8x128xf32>
    %75 = math.tanh %69 : vector<8x128xf32>
    %76 = vector.extract_strided_slice %74 {offsets = [0, 0], sizes = [8, 32], strides = [1, 1]} : vector<8x128xf32> to vector<8x32xf32>
    %77 = vector.extract_strided_slice %74 {offsets = [0, 32], sizes = [8, 32], strides = [1, 1]} : vector<8x128xf32> to vector<8x32xf32>
    %78 = vector.extract_strided_slice %75 {offsets = [0, 64], sizes = [8, 32], strides = [1, 1]} : vector<8x128xf32> to vector<8x32xf32>
    %79 = vector.extract_strided_slice %74 {offsets = [0, 96], sizes = [8, 32], strides = [1, 1]} : vector<8x128xf32> to vector<8x32xf32>
    %80 = arith.mulf %77, %63 : vector<8x32xf32>
    %81 = arith.mulf %76, %78 : vector<8x32xf32>
    %82 = arith.addf %80, %81 : vector<8x32xf32>
    %83 = math.tanh %82 : vector<8x32xf32>
    %84 = arith.mulf %79, %83 : vector<8x32xf32>
    %85 = vector.extract_strided_slice %6 {offsets = [32, 0], sizes = [8, 128], strides = [1, 1]} : vector<64x128xf32> to vector<8x128xf32>
    %c0_24 = arith.constant 0 : index
    %c0_25 = arith.constant 0 : index
    %86 = vector.load %arg3[%c0_24, %c0_25] : memref<32x128xf32, #tpu.memory_space<vmem>>, vector<32x128xf32>
    %cst_26 = arith.constant dense<0.000000e+00> : vector<8x128xf32>
    %87 = tpu.matmul %84, %86, %cst_26 {dimension_numbers = #tpu.dot_dimension_numbers<[1], [0], [0], [1], [0, 0, 1, 1], [], []>} : vector<8x32xf32>, vector<32x128xf32>, vector<8x128xf32> -> vector<8x128xf32>
    %88 = arith.addf %85, %87 : vector<8x128xf32>
    %89 = arith.negf %88 : vector<8x128xf32>
    %90 = math.exp %89 : vector<8x128xf32>
    %cst_27 = arith.constant 1.000000e+00 : f32
    %91 = vector.broadcast %cst_27 : f32 to vector<8x128xf32>
    %92 = arith.addf %91, %90 : vector<8x128xf32>
    %93 = arith.divf %91, %92 : vector<8x128xf32>
    %94 = math.tanh %88 : vector<8x128xf32>
    %95 = vector.extract_strided_slice %93 {offsets = [0, 0], sizes = [8, 32], strides = [1, 1]} : vector<8x128xf32> to vector<8x32xf32>
    %96 = vector.extract_strided_slice %93 {offsets = [0, 32], sizes = [8, 32], strides = [1, 1]} : vector<8x128xf32> to vector<8x32xf32>
    %97 = vector.extract_strided_slice %94 {offsets = [0, 64], sizes = [8, 32], strides = [1, 1]} : vector<8x128xf32> to vector<8x32xf32>
    %98 = vector.extract_strided_slice %93 {offsets = [0, 96], sizes = [8, 32], strides = [1, 1]} : vector<8x128xf32> to vector<8x32xf32>
    %99 = arith.mulf %96, %82 : vector<8x32xf32>
    %100 = arith.mulf %95, %97 : vector<8x32xf32>
    %101 = arith.addf %99, %100 : vector<8x32xf32>
    %102 = math.tanh %101 : vector<8x32xf32>
    %103 = arith.mulf %98, %102 : vector<8x32xf32>
    %104 = vector.extract_strided_slice %6 {offsets = [40, 0], sizes = [8, 128], strides = [1, 1]} : vector<64x128xf32> to vector<8x128xf32>
    %c0_28 = arith.constant 0 : index
    %c0_29 = arith.constant 0 : index
    %105 = vector.load %arg3[%c0_28, %c0_29] : memref<32x128xf32, #tpu.memory_space<vmem>>, vector<32x128xf32>
    %cst_30 = arith.constant dense<0.000000e+00> : vector<8x128xf32>
    %106 = tpu.matmul %103, %105, %cst_30 {dimension_numbers = #tpu.dot_dimension_numbers<[1], [0], [0], [1], [0, 0, 1, 1], [], []>} : vector<8x32xf32>, vector<32x128xf32>, vector<8x128xf32> -> vector<8x128xf32>
    %107 = arith.addf %104, %106 : vector<8x128xf32>
    %108 = arith.negf %107 : vector<8x128xf32>
    %109 = math.exp %108 : vector<8x128xf32>
    %cst_31 = arith.constant 1.000000e+00 : f32
    %110 = vector.broadcast %cst_31 : f32 to vector<8x128xf32>
    %111 = arith.addf %110, %109 : vector<8x128xf32>
    %112 = arith.divf %110, %111 : vector<8x128xf32>
    %113 = math.tanh %107 : vector<8x128xf32>
    %114 = vector.extract_strided_slice %112 {offsets = [0, 0], sizes = [8, 32], strides = [1, 1]} : vector<8x128xf32> to vector<8x32xf32>
    %115 = vector.extract_strided_slice %112 {offsets = [0, 32], sizes = [8, 32], strides = [1, 1]} : vector<8x128xf32> to vector<8x32xf32>
    %116 = vector.extract_strided_slice %113 {offsets = [0, 64], sizes = [8, 32], strides = [1, 1]} : vector<8x128xf32> to vector<8x32xf32>
    %117 = vector.extract_strided_slice %112 {offsets = [0, 96], sizes = [8, 32], strides = [1, 1]} : vector<8x128xf32> to vector<8x32xf32>
    %118 = arith.mulf %115, %101 : vector<8x32xf32>
    %119 = arith.mulf %114, %116 : vector<8x32xf32>
    %120 = arith.addf %118, %119 : vector<8x32xf32>
    %121 = math.tanh %120 : vector<8x32xf32>
    %122 = arith.mulf %117, %121 : vector<8x32xf32>
    %123 = vector.extract_strided_slice %6 {offsets = [48, 0], sizes = [8, 128], strides = [1, 1]} : vector<64x128xf32> to vector<8x128xf32>
    %c0_32 = arith.constant 0 : index
    %c0_33 = arith.constant 0 : index
    %124 = vector.load %arg3[%c0_32, %c0_33] : memref<32x128xf32, #tpu.memory_space<vmem>>, vector<32x128xf32>
    %cst_34 = arith.constant dense<0.000000e+00> : vector<8x128xf32>
    %125 = tpu.matmul %122, %124, %cst_34 {dimension_numbers = #tpu.dot_dimension_numbers<[1], [0], [0], [1], [0, 0, 1, 1], [], []>} : vector<8x32xf32>, vector<32x128xf32>, vector<8x128xf32> -> vector<8x128xf32>
    %126 = arith.addf %123, %125 : vector<8x128xf32>
    %127 = arith.negf %126 : vector<8x128xf32>
    %128 = math.exp %127 : vector<8x128xf32>
    %cst_35 = arith.constant 1.000000e+00 : f32
    %129 = vector.broadcast %cst_35 : f32 to vector<8x128xf32>
    %130 = arith.addf %129, %128 : vector<8x128xf32>
    %131 = arith.divf %129, %130 : vector<8x128xf32>
    %132 = math.tanh %126 : vector<8x128xf32>
    %133 = vector.extract_strided_slice %131 {offsets = [0, 0], sizes = [8, 32], strides = [1, 1]} : vector<8x128xf32> to vector<8x32xf32>
    %134 = vector.extract_strided_slice %131 {offsets = [0, 32], sizes = [8, 32], strides = [1, 1]} : vector<8x128xf32> to vector<8x32xf32>
    %135 = vector.extract_strided_slice %132 {offsets = [0, 64], sizes = [8, 32], strides = [1, 1]} : vector<8x128xf32> to vector<8x32xf32>
    %136 = vector.extract_strided_slice %131 {offsets = [0, 96], sizes = [8, 32], strides = [1, 1]} : vector<8x128xf32> to vector<8x32xf32>
    %137 = arith.mulf %134, %120 : vector<8x32xf32>
    %138 = arith.mulf %133, %135 : vector<8x32xf32>
    %139 = arith.addf %137, %138 : vector<8x32xf32>
    %140 = math.tanh %139 : vector<8x32xf32>
    %141 = arith.mulf %136, %140 : vector<8x32xf32>
    %142 = vector.extract_strided_slice %6 {offsets = [56, 0], sizes = [8, 128], strides = [1, 1]} : vector<64x128xf32> to vector<8x128xf32>
    %c0_36 = arith.constant 0 : index
    %c0_37 = arith.constant 0 : index
    %143 = vector.load %arg3[%c0_36, %c0_37] : memref<32x128xf32, #tpu.memory_space<vmem>>, vector<32x128xf32>
    %cst_38 = arith.constant dense<0.000000e+00> : vector<8x128xf32>
    %144 = tpu.matmul %141, %143, %cst_38 {dimension_numbers = #tpu.dot_dimension_numbers<[1], [0], [0], [1], [0, 0, 1, 1], [], []>} : vector<8x32xf32>, vector<32x128xf32>, vector<8x128xf32> -> vector<8x128xf32>
    %145 = arith.addf %142, %144 : vector<8x128xf32>
    %146 = arith.negf %145 : vector<8x128xf32>
    %147 = math.exp %146 : vector<8x128xf32>
    %cst_39 = arith.constant 1.000000e+00 : f32
    %148 = vector.broadcast %cst_39 : f32 to vector<8x128xf32>
    %149 = arith.addf %148, %147 : vector<8x128xf32>
    %150 = arith.divf %148, %149 : vector<8x128xf32>
    %151 = math.tanh %145 : vector<8x128xf32>
    %152 = vector.extract_strided_slice %150 {offsets = [0, 0], sizes = [8, 32], strides = [1, 1]} : vector<8x128xf32> to vector<8x32xf32>
    %153 = vector.extract_strided_slice %150 {offsets = [0, 32], sizes = [8, 32], strides = [1, 1]} : vector<8x128xf32> to vector<8x32xf32>
    %154 = vector.extract_strided_slice %151 {offsets = [0, 64], sizes = [8, 32], strides = [1, 1]} : vector<8x128xf32> to vector<8x32xf32>
    %155 = vector.extract_strided_slice %150 {offsets = [0, 96], sizes = [8, 32], strides = [1, 1]} : vector<8x128xf32> to vector<8x32xf32>
    %156 = arith.mulf %153, %139 : vector<8x32xf32>
    %157 = arith.mulf %152, %154 : vector<8x32xf32>
    %158 = arith.addf %156, %157 : vector<8x32xf32>
    %159 = math.tanh %158 : vector<8x32xf32>
    %160 = arith.mulf %155, %159 : vector<8x32xf32>
    %c0_40 = arith.constant 0 : index
    %c0_41 = arith.constant 0 : index
    %161 = vector.load %arg5[%c0_40, %c0_41] : memref<32x64xf32, #tpu.memory_space<vmem>>, vector<32x64xf32>
    %cst_42 = arith.constant dense<0.000000e+00> : vector<8x64xf32>
    %162 = tpu.matmul %160, %161, %cst_42 {dimension_numbers = #tpu.dot_dimension_numbers<[1], [0], [0], [1], [0, 0, 1, 1], [], []>} : vector<8x32xf32>, vector<32x64xf32>, vector<8x64xf32> -> vector<8x64xf32>
    %c0_43 = arith.constant 0 : index
    %c0_44 = arith.constant 0 : index
    %163 = vector.load %arg7[%c0_43, %c0_44] : memref<1x64xf32, #tpu.memory_space<vmem>>, vector<1x64xf32>
    %164 = vector.broadcast %163 : vector<1x64xf32> to vector<8x64xf32>
    %165 = arith.addf %162, %164 : vector<8x64xf32>
    %cst_45 = arith.constant 0.000000e+00 : f32
    %166 = vector.broadcast %cst_45 : f32 to vector<8x16xf32>
    %cst_46 = arith.constant 0.000000e+00 : f32
    %167 = vector.broadcast %cst_46 : f32 to vector<8x16xf32>
    %c0_47 = arith.constant 0 : index
    %c0_48 = arith.constant 0 : index
    %168 = vector.load %arg6[%c0_47, %c0_48] : memref<16x64xf32, #tpu.memory_space<vmem>>, vector<16x64xf32>
    %cst_49 = arith.constant dense<0.000000e+00> : vector<8x64xf32>
    %169 = tpu.matmul %166, %168, %cst_49 {dimension_numbers = #tpu.dot_dimension_numbers<[1], [0], [0], [1], [0, 0, 1, 1], [], []>} : vector<8x16xf32>, vector<16x64xf32>, vector<8x64xf32> -> vector<8x64xf32>
    %170 = arith.addf %165, %169 : vector<8x64xf32>
    %171 = arith.negf %170 : vector<8x64xf32>
    %172 = math.exp %171 : vector<8x64xf32>
    %cst_50 = arith.constant 1.000000e+00 : f32
    %173 = vector.broadcast %cst_50 : f32 to vector<8x64xf32>
    %174 = arith.addf %173, %172 : vector<8x64xf32>
    %175 = arith.divf %173, %174 : vector<8x64xf32>
    %176 = math.tanh %170 : vector<8x64xf32>
    %177 = vector.extract_strided_slice %175 {offsets = [0, 0], sizes = [8, 16], strides = [1, 1]} : vector<8x64xf32> to vector<8x16xf32>
    %178 = vector.extract_strided_slice %175 {offsets = [0, 16], sizes = [8, 16], strides = [1, 1]} : vector<8x64xf32> to vector<8x16xf32>
    %179 = vector.extract_strided_slice %176 {offsets = [0, 32], sizes = [8, 16], strides = [1, 1]} : vector<8x64xf32> to vector<8x16xf32>
    %180 = vector.extract_strided_slice %175 {offsets = [0, 48], sizes = [8, 16], strides = [1, 1]} : vector<8x64xf32> to vector<8x16xf32>
    %181 = arith.mulf %178, %167 : vector<8x16xf32>
    %182 = arith.mulf %177, %179 : vector<8x16xf32>
    %183 = arith.addf %181, %182 : vector<8x16xf32>
    %184 = math.tanh %183 : vector<8x16xf32>
    %185 = arith.mulf %180, %184 : vector<8x16xf32>
    %c0_51 = arith.constant 0 : index
    %c0_52 = arith.constant 0 : index
    %186 = vector.load %arg6[%c0_51, %c0_52] : memref<16x64xf32, #tpu.memory_space<vmem>>, vector<16x64xf32>
    %cst_53 = arith.constant dense<0.000000e+00> : vector<8x64xf32>
    %187 = tpu.matmul %185, %186, %cst_53 {dimension_numbers = #tpu.dot_dimension_numbers<[1], [0], [0], [1], [0, 0, 1, 1], [], []>} : vector<8x16xf32>, vector<16x64xf32>, vector<8x64xf32> -> vector<8x64xf32>
    %188 = arith.addf %165, %187 : vector<8x64xf32>
    %189 = arith.negf %188 : vector<8x64xf32>
    %190 = math.exp %189 : vector<8x64xf32>
    %cst_54 = arith.constant 1.000000e+00 : f32
    %191 = vector.broadcast %cst_54 : f32 to vector<8x64xf32>
    %192 = arith.addf %191, %190 : vector<8x64xf32>
    %193 = arith.divf %191, %192 : vector<8x64xf32>
    %194 = math.tanh %188 : vector<8x64xf32>
    %195 = vector.extract_strided_slice %193 {offsets = [0, 0], sizes = [8, 16], strides = [1, 1]} : vector<8x64xf32> to vector<8x16xf32>
    %196 = vector.extract_strided_slice %193 {offsets = [0, 16], sizes = [8, 16], strides = [1, 1]} : vector<8x64xf32> to vector<8x16xf32>
    %197 = vector.extract_strided_slice %194 {offsets = [0, 32], sizes = [8, 16], strides = [1, 1]} : vector<8x64xf32> to vector<8x16xf32>
    %198 = vector.extract_strided_slice %193 {offsets = [0, 48], sizes = [8, 16], strides = [1, 1]} : vector<8x64xf32> to vector<8x16xf32>
    %199 = arith.mulf %196, %183 : vector<8x16xf32>
    %200 = arith.mulf %195, %197 : vector<8x16xf32>
    %201 = arith.addf %199, %200 : vector<8x16xf32>
    %202 = math.tanh %201 : vector<8x16xf32>
    %203 = arith.mulf %198, %202 : vector<8x16xf32>
    %c0_55 = arith.constant 0 : index
    %c0_56 = arith.constant 0 : index
    %204 = vector.load %arg6[%c0_55, %c0_56] : memref<16x64xf32, #tpu.memory_space<vmem>>, vector<16x64xf32>
    %cst_57 = arith.constant dense<0.000000e+00> : vector<8x64xf32>
    %205 = tpu.matmul %203, %204, %cst_57 {dimension_numbers = #tpu.dot_dimension_numbers<[1], [0], [0], [1], [0, 0, 1, 1], [], []>} : vector<8x16xf32>, vector<16x64xf32>, vector<8x64xf32> -> vector<8x64xf32>
    %206 = arith.addf %165, %205 : vector<8x64xf32>
    %207 = arith.negf %206 : vector<8x64xf32>
    %208 = math.exp %207 : vector<8x64xf32>
    %cst_58 = arith.constant 1.000000e+00 : f32
    %209 = vector.broadcast %cst_58 : f32 to vector<8x64xf32>
    %210 = arith.addf %209, %208 : vector<8x64xf32>
    %211 = arith.divf %209, %210 : vector<8x64xf32>
    %212 = math.tanh %206 : vector<8x64xf32>
    %213 = vector.extract_strided_slice %211 {offsets = [0, 0], sizes = [8, 16], strides = [1, 1]} : vector<8x64xf32> to vector<8x16xf32>
    %214 = vector.extract_strided_slice %211 {offsets = [0, 16], sizes = [8, 16], strides = [1, 1]} : vector<8x64xf32> to vector<8x16xf32>
    %215 = vector.extract_strided_slice %212 {offsets = [0, 32], sizes = [8, 16], strides = [1, 1]} : vector<8x64xf32> to vector<8x16xf32>
    %216 = vector.extract_strided_slice %211 {offsets = [0, 48], sizes = [8, 16], strides = [1, 1]} : vector<8x64xf32> to vector<8x16xf32>
    %217 = arith.mulf %214, %201 : vector<8x16xf32>
    %218 = arith.mulf %213, %215 : vector<8x16xf32>
    %219 = arith.addf %217, %218 : vector<8x16xf32>
    %220 = math.tanh %219 : vector<8x16xf32>
    %221 = arith.mulf %216, %220 : vector<8x16xf32>
    %c0_59 = arith.constant 0 : index
    %c0_60 = arith.constant 0 : index
    %222 = vector.load %arg6[%c0_59, %c0_60] : memref<16x64xf32, #tpu.memory_space<vmem>>, vector<16x64xf32>
    %cst_61 = arith.constant dense<0.000000e+00> : vector<8x64xf32>
    %223 = tpu.matmul %221, %222, %cst_61 {dimension_numbers = #tpu.dot_dimension_numbers<[1], [0], [0], [1], [0, 0, 1, 1], [], []>} : vector<8x16xf32>, vector<16x64xf32>, vector<8x64xf32> -> vector<8x64xf32>
    %224 = arith.addf %165, %223 : vector<8x64xf32>
    %225 = arith.negf %224 : vector<8x64xf32>
    %226 = math.exp %225 : vector<8x64xf32>
    %cst_62 = arith.constant 1.000000e+00 : f32
    %227 = vector.broadcast %cst_62 : f32 to vector<8x64xf32>
    %228 = arith.addf %227, %226 : vector<8x64xf32>
    %229 = arith.divf %227, %228 : vector<8x64xf32>
    %230 = math.tanh %224 : vector<8x64xf32>
    %231 = vector.extract_strided_slice %229 {offsets = [0, 0], sizes = [8, 16], strides = [1, 1]} : vector<8x64xf32> to vector<8x16xf32>
    %232 = vector.extract_strided_slice %229 {offsets = [0, 16], sizes = [8, 16], strides = [1, 1]} : vector<8x64xf32> to vector<8x16xf32>
    %233 = vector.extract_strided_slice %230 {offsets = [0, 32], sizes = [8, 16], strides = [1, 1]} : vector<8x64xf32> to vector<8x16xf32>
    %234 = vector.extract_strided_slice %229 {offsets = [0, 48], sizes = [8, 16], strides = [1, 1]} : vector<8x64xf32> to vector<8x16xf32>
    %235 = arith.mulf %232, %219 : vector<8x16xf32>
    %236 = arith.mulf %231, %233 : vector<8x16xf32>
    %237 = arith.addf %235, %236 : vector<8x16xf32>
    %238 = math.tanh %237 : vector<8x16xf32>
    %239 = arith.mulf %234, %238 : vector<8x16xf32>
    %c0_63 = arith.constant 0 : index
    %c0_64 = arith.constant 0 : index
    %240 = vector.load %arg6[%c0_63, %c0_64] : memref<16x64xf32, #tpu.memory_space<vmem>>, vector<16x64xf32>
    %cst_65 = arith.constant dense<0.000000e+00> : vector<8x64xf32>
    %241 = tpu.matmul %239, %240, %cst_65 {dimension_numbers = #tpu.dot_dimension_numbers<[1], [0], [0], [1], [0, 0, 1, 1], [], []>} : vector<8x16xf32>, vector<16x64xf32>, vector<8x64xf32> -> vector<8x64xf32>
    %242 = arith.addf %165, %241 : vector<8x64xf32>
    %243 = arith.negf %242 : vector<8x64xf32>
    %244 = math.exp %243 : vector<8x64xf32>
    %cst_66 = arith.constant 1.000000e+00 : f32
    %245 = vector.broadcast %cst_66 : f32 to vector<8x64xf32>
    %246 = arith.addf %245, %244 : vector<8x64xf32>
    %247 = arith.divf %245, %246 : vector<8x64xf32>
    %248 = math.tanh %242 : vector<8x64xf32>
    %249 = vector.extract_strided_slice %247 {offsets = [0, 0], sizes = [8, 16], strides = [1, 1]} : vector<8x64xf32> to vector<8x16xf32>
    %250 = vector.extract_strided_slice %247 {offsets = [0, 16], sizes = [8, 16], strides = [1, 1]} : vector<8x64xf32> to vector<8x16xf32>
    %251 = vector.extract_strided_slice %248 {offsets = [0, 32], sizes = [8, 16], strides = [1, 1]} : vector<8x64xf32> to vector<8x16xf32>
    %252 = vector.extract_strided_slice %247 {offsets = [0, 48], sizes = [8, 16], strides = [1, 1]} : vector<8x64xf32> to vector<8x16xf32>
    %253 = arith.mulf %250, %237 : vector<8x16xf32>
    %254 = arith.mulf %249, %251 : vector<8x16xf32>
    %255 = arith.addf %253, %254 : vector<8x16xf32>
    %256 = math.tanh %255 : vector<8x16xf32>
    %257 = arith.mulf %252, %256 : vector<8x16xf32>
    %c0_67 = arith.constant 0 : index
    %c0_68 = arith.constant 0 : index
    %258 = vector.load %arg6[%c0_67, %c0_68] : memref<16x64xf32, #tpu.memory_space<vmem>>, vector<16x64xf32>
    %cst_69 = arith.constant dense<0.000000e+00> : vector<8x64xf32>
    %259 = tpu.matmul %257, %258, %cst_69 {dimension_numbers = #tpu.dot_dimension_numbers<[1], [0], [0], [1], [0, 0, 1, 1], [], []>} : vector<8x16xf32>, vector<16x64xf32>, vector<8x64xf32> -> vector<8x64xf32>
    %260 = arith.addf %165, %259 : vector<8x64xf32>
    %261 = arith.negf %260 : vector<8x64xf32>
    %262 = math.exp %261 : vector<8x64xf32>
    %cst_70 = arith.constant 1.000000e+00 : f32
    %263 = vector.broadcast %cst_70 : f32 to vector<8x64xf32>
    %264 = arith.addf %263, %262 : vector<8x64xf32>
    %265 = arith.divf %263, %264 : vector<8x64xf32>
    %266 = math.tanh %260 : vector<8x64xf32>
    %267 = vector.extract_strided_slice %265 {offsets = [0, 0], sizes = [8, 16], strides = [1, 1]} : vector<8x64xf32> to vector<8x16xf32>
    %268 = vector.extract_strided_slice %265 {offsets = [0, 16], sizes = [8, 16], strides = [1, 1]} : vector<8x64xf32> to vector<8x16xf32>
    %269 = vector.extract_strided_slice %266 {offsets = [0, 32], sizes = [8, 16], strides = [1, 1]} : vector<8x64xf32> to vector<8x16xf32>
    %270 = vector.extract_strided_slice %265 {offsets = [0, 48], sizes = [8, 16], strides = [1, 1]} : vector<8x64xf32> to vector<8x16xf32>
    %271 = arith.mulf %268, %255 : vector<8x16xf32>
    %272 = arith.mulf %267, %269 : vector<8x16xf32>
    %273 = arith.addf %271, %272 : vector<8x16xf32>
    %274 = math.tanh %273 : vector<8x16xf32>
    %275 = arith.mulf %270, %274 : vector<8x16xf32>
    %c0_71 = arith.constant 0 : index
    %c0_72 = arith.constant 0 : index
    %276 = vector.load %arg6[%c0_71, %c0_72] : memref<16x64xf32, #tpu.memory_space<vmem>>, vector<16x64xf32>
    %cst_73 = arith.constant dense<0.000000e+00> : vector<8x64xf32>
    %277 = tpu.matmul %275, %276, %cst_73 {dimension_numbers = #tpu.dot_dimension_numbers<[1], [0], [0], [1], [0, 0, 1, 1], [], []>} : vector<8x16xf32>, vector<16x64xf32>, vector<8x64xf32> -> vector<8x64xf32>
    %278 = arith.addf %165, %277 : vector<8x64xf32>
    %279 = arith.negf %278 : vector<8x64xf32>
    %280 = math.exp %279 : vector<8x64xf32>
    %cst_74 = arith.constant 1.000000e+00 : f32
    %281 = vector.broadcast %cst_74 : f32 to vector<8x64xf32>
    %282 = arith.addf %281, %280 : vector<8x64xf32>
    %283 = arith.divf %281, %282 : vector<8x64xf32>
    %284 = math.tanh %278 : vector<8x64xf32>
    %285 = vector.extract_strided_slice %283 {offsets = [0, 0], sizes = [8, 16], strides = [1, 1]} : vector<8x64xf32> to vector<8x16xf32>
    %286 = vector.extract_strided_slice %283 {offsets = [0, 16], sizes = [8, 16], strides = [1, 1]} : vector<8x64xf32> to vector<8x16xf32>
    %287 = vector.extract_strided_slice %284 {offsets = [0, 32], sizes = [8, 16], strides = [1, 1]} : vector<8x64xf32> to vector<8x16xf32>
    %288 = vector.extract_strided_slice %283 {offsets = [0, 48], sizes = [8, 16], strides = [1, 1]} : vector<8x64xf32> to vector<8x16xf32>
    %289 = arith.mulf %286, %273 : vector<8x16xf32>
    %290 = arith.mulf %285, %287 : vector<8x16xf32>
    %291 = arith.addf %289, %290 : vector<8x16xf32>
    %292 = math.tanh %291 : vector<8x16xf32>
    %293 = arith.mulf %288, %292 : vector<8x16xf32>
    %c0_75 = arith.constant 0 : index
    %c0_76 = arith.constant 0 : index
    %294 = vector.load %arg6[%c0_75, %c0_76] : memref<16x64xf32, #tpu.memory_space<vmem>>, vector<16x64xf32>
    %cst_77 = arith.constant dense<0.000000e+00> : vector<8x64xf32>
    %295 = tpu.matmul %293, %294, %cst_77 {dimension_numbers = #tpu.dot_dimension_numbers<[1], [0], [0], [1], [0, 0, 1, 1], [], []>} : vector<8x16xf32>, vector<16x64xf32>, vector<8x64xf32> -> vector<8x64xf32>
    %296 = arith.addf %165, %295 : vector<8x64xf32>
    %297 = arith.negf %296 : vector<8x64xf32>
    %298 = math.exp %297 : vector<8x64xf32>
    %cst_78 = arith.constant 1.000000e+00 : f32
    %299 = vector.broadcast %cst_78 : f32 to vector<8x64xf32>
    %300 = arith.addf %299, %298 : vector<8x64xf32>
    %301 = arith.divf %299, %300 : vector<8x64xf32>
    %302 = math.tanh %296 : vector<8x64xf32>
    %303 = vector.extract_strided_slice %301 {offsets = [0, 0], sizes = [8, 16], strides = [1, 1]} : vector<8x64xf32> to vector<8x16xf32>
    %304 = vector.extract_strided_slice %301 {offsets = [0, 16], sizes = [8, 16], strides = [1, 1]} : vector<8x64xf32> to vector<8x16xf32>
    %305 = vector.extract_strided_slice %302 {offsets = [0, 32], sizes = [8, 16], strides = [1, 1]} : vector<8x64xf32> to vector<8x16xf32>
    %306 = vector.extract_strided_slice %301 {offsets = [0, 48], sizes = [8, 16], strides = [1, 1]} : vector<8x64xf32> to vector<8x16xf32>
    %307 = arith.mulf %304, %291 : vector<8x16xf32>
    %308 = arith.mulf %303, %305 : vector<8x16xf32>
    %309 = arith.addf %307, %308 : vector<8x16xf32>
    %310 = math.tanh %309 : vector<8x16xf32>
    %311 = arith.mulf %306, %310 : vector<8x16xf32>
    %312 = tpu.concatenate %185, %203, %221, %239, %257, %275, %293, %311 in 1 : vector<8x16xf32>, vector<8x16xf32>, vector<8x16xf32>, vector<8x16xf32>, vector<8x16xf32>, vector<8x16xf32>, vector<8x16xf32>, vector<8x16xf32> -> vector<8x128xf32>
    %c0_79 = arith.constant 0 : index
    %c0_80 = arith.constant 0 : index
    %313 = vector.load %arg8[%c0_79, %c0_80] : memref<8x128xf32, #tpu.memory_space<vmem>>, vector<8x128xf32>
    tpu.vector_store %arg8[%c0_79, %c0_80], %312 {strides = array<i32>} : memref<8x128xf32, #tpu.memory_space<vmem>>, vector<8x128xf32>,
    return
  }
  func.func @transform_0(%arg0: i32) -> (i32, i32, i32) {
    %c0_i32 = arith.constant 0 : i32
    %c0_i32_0 = arith.constant 0 : i32
    %c0_i32_1 = arith.constant 0 : i32
    %c0_i32_2 = arith.constant 0 : i32
    return %c0_i32, %c0_i32_0, %c0_i32_1 : i32, i32, i32
  }
  func.func @transform_1(%arg0: i32) -> (i32, i32) {
    %c0_i32 = arith.constant 0 : i32
    %c0_i32_0 = arith.constant 0 : i32
    %c0_i32_1 = arith.constant 0 : i32
    return %c0_i32, %c0_i32_0 : i32, i32
  }
  func.func @transform_2(%arg0: i32) -> (i32, i32) {
    %c0_i32 = arith.constant 0 : i32
    %c0_i32_0 = arith.constant 0 : i32
    %c0_i32_1 = arith.constant 0 : i32
    return %c0_i32, %c0_i32_0 : i32, i32
  }
  func.func @transform_3(%arg0: i32) -> (i32, i32) {
    %c0_i32 = arith.constant 0 : i32
    %c0_i32_0 = arith.constant 0 : i32
    %c0_i32_1 = arith.constant 0 : i32
    return %c0_i32, %c0_i32_0 : i32, i32
  }
  func.func @transform_4(%arg0: i32) -> (i32, i32) {
    %c0_i32 = arith.constant 0 : i32
    %c0_i32_0 = arith.constant 0 : i32
    %c0_i32_1 = arith.constant 0 : i32
    return %c0_i32, %c0_i32_0 : i32, i32
  }
  func.func @transform_5(%arg0: i32) -> (i32, i32) {
    %c0_i32 = arith.constant 0 : i32
    %c0_i32_0 = arith.constant 0 : i32
    %c0_i32_1 = arith.constant 0 : i32
    return %c0_i32, %c0_i32_0 : i32, i32
  }
  func.func @transform_6(%arg0: i32) -> (i32, i32) {
    %c0_i32 = arith.constant 0 : i32
    %c0_i32_0 = arith.constant 0 : i32
    %c0_i32_1 = arith.constant 0 : i32
    return %c0_i32, %c0_i32_0 : i32, i32
  }
  func.func @transform_7(%arg0: i32) -> (i32, i32) {
    %c0_i32 = arith.constant 0 : i32
    %c0_i32_0 = arith.constant 0 : i32
    %c0_i32_1 = arith.constant 0 : i32
    return %c0_i32, %c0_i32_0 : i32, i32
  }
}

</mosaic_0001>

<llo_original>
// kernel: tpu_custom_call.1
$region0: #{tpu_custom_call.1}
  #allocation0 [shape = 'u32[]', space=smem, size = 0x4, offset = 0x4, fixed_abs, tag = 'smem constant byte address 0x4 - core index']
  #allocation1 [shape = 'u32[72,128]{1,0:T(1,128)}', space=vmem, size = 0x9000, scoped, tag = 'internal scratch']
  %s0 = inlined_call_operand.hbm [shape: f32[8,8,16], index: 0, kind: input, shape index: {}]
  %s1 = inlined_call_operand.hbm [shape: f32[16,128], index: 1, kind: input, shape index: {}]
  %s2 = inlined_call_operand.hbm [shape: f32[32,128], index: 2, kind: input, shape index: {}]
  %s3 = inlined_call_operand.vmem [shape: f32[1,128], index: 3, kind: input, shape index: {}]
  %s4 = inlined_call_operand.hbm [shape: f32[32,64], index: 4, kind: input, shape index: {}]
  %s5 = inlined_call_operand.hbm [shape: f32[16,64], index: 5, kind: input, shape index: {}]
  %s6 = inlined_call_operand.vmem [shape: f32[1,64], index: 6, kind: input, shape index: {}]
  %s7 = inlined_call_operand.hbm [shape: f32[8,128], index: 7, kind: output, shape index: {}]
  %s8 = sld [smem:[#allocation0]]
  $region58: #{tpu_custom_call.1} parent=0
    _
  %s10 = ssub.s32 1, %s8
  %s11 = scalar_select 0, %s10, %s8
  $region1: #{tpu_custom_call.1} parent=0
    #allocation2 [shape = 'u8[32768]{0}', space=vmem, size = 0x8000, scoped, tag = 'input window, operand 0, single buffered']
    #allocation3 [shape = 's32[1]{0}', space=sflag, size = 0x4, scoped, tag = 'scoped memory for tpu_custom_call.1']
    #allocation4 [shape = 's32[1]{0}', space=sflag, size = 0x4, scoped, tag = 'scoped memory for tpu_custom_call.1']
    #allocation5 [shape = 'u8[8192]{0}', space=vmem, size = 0x2000, scoped, tag = 'input window, operand 1, single buffered']
    #allocation6 [shape = 's32[1]{0}', space=sflag, size = 0x4, scoped, tag = 'scoped memory for tpu_custom_call.1']
    #allocation7 [shape = 'u8[16384]{0}', space=vmem, size = 0x4000, scoped, tag = 'input window, operand 2, single buffered']
    #allocation8 [shape = 'u8[16384]{0}', space=vmem, size = 0x4000, scoped, tag = 'input window, operand 4, single buffered']
    #allocation9 [shape = 's32[1]{0}', space=sflag, size = 0x4, scoped, tag = 'scoped memory for tpu_custom_call.1']
    #allocation10 [shape = 'u8[8192]{0}', space=vmem, size = 0x2000, scoped, tag = 'input window, operand 5, single buffered']
    #allocation11 [shape = 'u8[4096]{0}', space=vmem, size = 0x1000, scoped, tag = 'output window, operand 0, single buffered']
    %12 = vsyncpa [#allocation3], 0
    %13 = vsyncpa [#allocation6], 0
    %14 = vsyncpa [#allocation9], 0
    %15 = vsyncpa [#allocation4], 0
    // Predicated region
    $region2: #{tpu_custom_call.1} parent=1 // pred_check
      _
    $region3: #{tpu_custom_call.1} parent=1 // pred_check_branch
      %17 = sbr.rel (0) target = $region5
    $region4: #{tpu_custom_call.1} parent=1 // pred_region
      %19 = vsyncadd [#allocation3], 0
      %s20 = sshll.u32 %s0, 4
      %s21 = int_to_ptr.hbm [resolvable:$true] %s20
      %s22 = sshll.u32 [#allocation2], 4
      %s23 = int_to_ptr.vmem [resolvable:$true] %s22
      %28 = dma.hbm_to_vmem [thread:$0]  %s21, 1024, %s23, [#allocation3], 128, 128, 8
    $region5: #{tpu_custom_call.1} parent=1 // pred_fallthru
      _
    // Predicated region
    $region6: #{tpu_custom_call.1} parent=1 // pred_check
      _
    $region7: #{tpu_custom_call.1} parent=1 // pred_check_branch
      %30 = sbr.rel (0) target = $region9
    $region8: #{tpu_custom_call.1} parent=1 // pred_region
      %32 = vsyncadd [#allocation6], 0
      %s33 = sshll.u32 %s1, 4
      %s34 = int_to_ptr.hbm [resolvable:$true] %s33
      %s35 = sshll.u32 [#allocation5], 4
      %s36 = int_to_ptr.vmem [resolvable:$true] %s35
      %41 = dma.hbm_to_vmem [thread:$0]  %s34, 256, %s36, [#allocation6], 128, 128, 8
    $region9: #{tpu_custom_call.1} parent=1 // pred_fallthru
      _
    // Predicated region
    $region10: #{tpu_custom_call.1} parent=1 // pred_check
      _
    $region11: #{tpu_custom_call.1} parent=1 // pred_check_branch
      %43 = sbr.rel (0) target = $region13
    $region12: #{tpu_custom_call.1} parent=1 // pred_region
      %45 = vsyncadd [#allocation6], 0
      %s46 = sshll.u32 %s2, 4
      %s47 = int_to_ptr.hbm [resolvable:$true] %s46
      %s48 = sshll.u32 [#allocation7], 4
      %s49 = int_to_ptr.vmem [resolvable:$true] %s48
      %54 = dma.hbm_to_vmem [thread:$0]  %s47, 512, %s49, [#allocation6], 128, 128, 8
    $region13: #{tpu_custom_call.1} parent=1 // pred_fallthru
      _
    // Predicated region
    $region14: #{tpu_custom_call.1} parent=1 // pred_check
      _
    $region15: #{tpu_custom_call.1} parent=1 // pred_check_branch
      %56 = sbr.rel (0) target = $region17
    $region16: #{tpu_custom_call.1} parent=1 // pred_region
      _
    $region17: #{tpu_custom_call.1} parent=1 // pred_fallthru
      _
    // Predicated region
    $region18: #{tpu_custom_call.1} parent=1 // pred_check
      _
    $region19: #{tpu_custom_call.1} parent=1 // pred_check_branch
      %58 = sbr.rel (0) target = $region21
    $region20: #{tpu_custom_call.1} parent=1 // pred_region
      %60 = vsyncadd [#allocation9], 0
      %s61 = sshll.u32 %s4, 4
      %s62 = int_to_ptr.hbm [resolvable:$true] %s61
      %s63 = sshll.u32 [#allocation8], 4
      %s64 = int_to_ptr.vmem [resolvable:$true] %s63
      %69 = dma.hbm_to_vmem [thread:$0]  %s62, 512, %s64, [#allocation9], 128, 128, 8
    $region21: #{tpu_custom_call.1} parent=1 // pred_fallthru
      _
    // Predicated region
    $region22: #{tpu_custom_call.1} parent=1 // pred_check
      _
    $region23: #{tpu_custom_call.1} parent=1 // pred_check_branch
      %71 = sbr.rel (0) target = $region25
    $region24: #{tpu_custom_call.1} parent=1 // pred_region
      %73 = vsyncadd [#allocation9], 0
      %s74 = sshll.u32 %s5, 4
      %s75 = int_to_ptr.hbm [resolvable:$true] %s74
      %s76 = sshll.u32 [#allocation10], 4
      %s77 = int_to_ptr.vmem [resolvable:$true] %s76
      %82 = dma.hbm_to_vmem [thread:$0]  %s75, 256, %s77, [#allocation9], 128, 128, 8
    $region25: #{tpu_custom_call.1} parent=1 // pred_fallthru
      _
    // Predicated region
    $region26: #{tpu_custom_call.1} parent=1 // pred_check
      _
    $region27: #{tpu_custom_call.1} parent=1 // pred_check_branch
      %84 = sbr.rel (0) target = $region29
    $region28: #{tpu_custom_call.1} parent=1 // pred_region
      _
    $region29: #{tpu_custom_call.1} parent=1 // pred_fallthru
      _
    // Predicated region
    $region30: #{tpu_custom_call.1} parent=1 // pred_check
      _
    $region31: #{tpu_custom_call.1} parent=1 // pred_check_branch
      %86 = sbr.rel (0) target = $region33
    $region32: #{tpu_custom_call.1} parent=1 // pred_region
      %88 = dma.done [#allocation3], 1024
    $region33: #{tpu_custom_call.1} parent=1 // pred_fallthru
      _
    // Predicated region
    $region34: #{tpu_custom_call.1} parent=1 // pred_check
      _
    $region35: #{tpu_custom_call.1} parent=1 // pred_check_branch
      %90 = sbr.rel (0) target = $region37
    $region36: #{tpu_custom_call.1} parent=1 // pred_region
      %92 = dma.done [#allocation6], 256
    $region37: #{tpu_custom_call.1} parent=1 // pred_fallthru
      _
    // Predicated region
    $region38: #{tpu_custom_call.1} parent=1 // pred_check
      _
    $region39: #{tpu_custom_call.1} parent=1 // pred_check_branch
      %94 = sbr.rel (0) target = $region41
    $region40: #{tpu_custom_call.1} parent=1 // pred_region
      %96 = dma.done [#allocation6], 512
    $region41: #{tpu_custom_call.1} parent=1 // pred_fallthru
      _
    // Predicated region
    $region42: #{tpu_custom_call.1} parent=1 // pred_check
      _
    $region43: #{tpu_custom_call.1} parent=1 // pred_check_branch
      %98 = sbr.rel (0) target = $region45
    $region44: #{tpu_custom_call.1} parent=1 // pred_region
      %100 = dma.done [#allocation9], 512
    $region45: #{tpu_custom_call.1} parent=1 // pred_fallthru
      _
    // Predicated region
    $region46: #{tpu_custom_call.1} parent=1 // pred_check
      _
    $region47: #{tpu_custom_call.1} parent=1 // pred_check_branch
      %102 = sbr.rel (0) target = $region49
    $region48: #{tpu_custom_call.1} parent=1 // pred_region
      %104 = dma.done [#allocation9], 256
    $region49: #{tpu_custom_call.1} parent=1 // pred_fallthru
      _
    %v105 = vld [vmem:[#allocation2] sm:$0xff]
    %v106 = vld [vmem:[#allocation2 + $0x8] sm:$0xff]
    %v107 = vld [vmem:[#allocation2 + $0x10] sm:$0xff]
    %v108 = vld [vmem:[#allocation2 + $0x18] sm:$0xff]
    %v109 = vld [vmem:[#allocation2 + $0x20] sm:$0xff]
    %v110 = vld [vmem:[#allocation2 + $0x28] sm:$0xff]
    %v111 = vld [vmem:[#allocation2 + $0x30] sm:$0xff]
    %v112 = vld [vmem:[#allocation2 + $0x38] sm:$0xff]
    %v113 = vld [vmem:[#allocation5] sm:$0xff]
    %v114 = vld [vmem:[#allocation5 + $0x8] sm:$0xff]
    %v115 = vld [vmem:[%s3] sm:$0x1]
    %v117 = vperm.slane %v115, 0
    %vm119 = vcmask 130048
    %v121 = vsel %vm119, %v105, 0
    %v124 = vsel %vm119, %v106, 0
    %v127 = vsel %vm119, %v107, 0
    %v130 = vsel %vm119, %v108, 0
    %v133 = vsel %vm119, %v109, 0
    %v136 = vsel %vm119, %v110, 0
    %v139 = vsel %vm119, %v111, 0
    %v142 = vsel %vm119, %v112, 0
    %144 = vmatpush.msra.mxu0 0.0
    %145 = vmatpush.msra.mxu0 0.0
    %146 = vmatpush.msra.mxu0 0.0
    %147 = vmatpush.msra.mxu0 0.0
    %148 = vmatpush.msra.mxu0 0.0
    %149 = vmatpush.msra.mxu0 0.0
    %150 = vmatpush.msra.mxu0 0.0
    %151 = vmatpush.msra.mxu0 0.0
    %152 = vmatpush.msra.mxu0 0.0
    %153 = vmatpush.msra.mxu0 0.0
    %154 = vmatpush.msra.mxu0 0.0
    %155 = vmatpush.msra.mxu0 0.0
    %156 = vmatpush.msra.mxu0 0.0
    %157 = vmatpush.msra.mxu0 0.0
    %158 = vmatpush.msra.mxu0 %v114
    %159 = vmatpush.msra.mxu0 %v113
    %160 = vmatmul.f32.gmra.mxu0 %v121
    %v161 = vpop.f32.mrf.mxu0
    %v162 = vadd.f32 %v117, %v161
    %163 = vmatmul.f32.gmra.mxu0 %v124
    %v164 = vpop.f32.mrf.mxu0
    %v165 = vadd.f32 %v117, %v164
    %166 = vmatmul.f32.gmra.mxu0 %v127
    %v167 = vpop.f32.mrf.mxu0
    %v168 = vadd.f32 %v117, %v167
    %169 = vmatmul.f32.gmra.mxu0 %v130
    %v170 = vpop.f32.mrf.mxu0
    %v171 = vadd.f32 %v117, %v170
    %172 = vmatmul.f32.gmra.mxu0 %v133
    %v173 = vpop.f32.mrf.mxu0
    %v174 = vadd.f32 %v117, %v173
    %175 = vmatmul.f32.gmra.mxu0 %v136
    %v176 = vpop.f32.mrf.mxu0
    %v177 = vadd.f32 %v117, %v176
    %178 = vmatmul.f32.gmra.mxu0 %v139
    %v179 = vpop.f32.mrf.mxu0
    %v180 = vadd.f32 %v117, %v179
    %181 = vmatmul.f32.gmra.mxu0 %v142
    %v182 = vpop.f32.mrf.mxu0
    %v183 = vadd.f32 %v117, %v182
    %184 = vdwg.mxu0
    %v185 = vld [vmem:[#allocation7] sm:$0xff]
    %v186 = vld [vmem:[#allocation7 + $0x8] sm:$0xff]
    %v187 = vld [vmem:[#allocation7 + $0x10] sm:$0xff]
    %v188 = vld [vmem:[#allocation7 + $0x18] sm:$0xff]
    %vm189 = vcmask 261120
    %v191 = vsel %vm189, 0.0, 0
    %193 = vmatpush.msra.mxu0 0.0
    %194 = vmatpush.msra.mxu0 0.0
    %195 = vmatpush.msra.mxu0 0.0
    %196 = vmatpush.msra.mxu0 0.0
    %197 = vmatpush.msra.mxu0 0.0
    %198 = vmatpush.msra.mxu0 0.0
    %199 = vmatpush.msra.mxu0 0.0
    %200 = vmatpush.msra.mxu0 0.0
    %201 = vmatpush.msra.mxu0 0.0
    %202 = vmatpush.msra.mxu0 0.0
    %203 = vmatpush.msra.mxu0 0.0
    %204 = vmatpush.msra.mxu0 0.0
    %205 = vmatpush.msra.mxu0 %v188
    %206 = vmatpush.msra.mxu0 %v187
    %207 = vmatpush.msra.mxu0 %v186
    %208 = vmatpush.msra.mxu0 %v185
    %209 = vmatmul.f32.gmra.mxu0 %v191
    %v210 = vpop.f32.mrf.mxu0
    %v211 = vadd.f32 0.0, %v210
    %212 = vdwg.mxu0
    %v213 = vadd.f32 %v162, %v211
    %v214 = vxor.u32 %v213, 2147483648
    %v215 = vmul.f32 %v214, 1.442695
    %v216 = vpow.pop %v215
    %v217 = vadd.f32 %v216, 1.0
    %v218 = vrcp.pop %v217
    %v219 = vmul.f32 %v217, %v218
    %v220 = vsub.f32 1.0, %v219
    %v221 = vmul.f32 %v218, %v220
    %v222 = vadd.f32 %v218, %v221
    %vm223 = vweird.f32 %v217
    %vm224 = vweird.f32 %v218
    %vm225 = vmor %vm223, %vm224
    %v226 = vsel %vm225, %v218, %v222
    %v227 = vand.u32 2147483647, %v217
    %vm228 = vcmp.eq.f32.partialorder %v227, 8.507059e+37
    %v229 = vand.u32 %v217, 2147483648
    %v230 = vor.u32 1.1754944e-38, %v229
    %v231 = vsel %vm228, %v230, %v226
    %v232 = vmul.f32 1.0, %v231
    %v233 = vtanh.pop %v213
    %v234 = vmul.f32 %v232, 0.0
    %236 = vrot.lane.b32.xlu0 %v233, 64
    %v237 = vpop.permute.xlu0 %236
    %v239 = vmul.f32 %v232, %v237
    %241 = vrot.lane.b32.xlu0 %v239, 32
    %v242 = vpop.permute.xlu0 %241
    %v244 = vadd.f32 %v234, %v242
    %v245 = vtanh.pop %v244
    %247 = vrot.lane.b32.xlu0 %v245, 64
    %v248 = vpop.permute.xlu0 %247
    %v250 = vmul.f32 %v232, %v248
    %252 = vrot.lane.b32.xlu0 %v250, 32
    %v253 = vpop.permute.xlu0 %252
    %v254 = vsel %vm189, %v253, 0
    %256 = vmatpush.msra.mxu0 0.0
    %257 = vmatpush.msra.mxu0 0.0
    %258 = vmatpush.msra.mxu0 0.0
    %259 = vmatpush.msra.mxu0 0.0
    %260 = vmatpush.msra.mxu0 0.0
    %261 = vmatpush.msra.mxu0 0.0
    %262 = vmatpush.msra.mxu0 0.0
    %263 = vmatpush.msra.mxu0 0.0
    %264 = vmatpush.msra.mxu0 0.0
    %265 = vmatpush.msra.mxu0 0.0
    %266 = vmatpush.msra.mxu0 0.0
    %267 = vmatpush.msra.mxu0 0.0
    %268 = vmatpush.msra.mxu0 %v188
    %269 = vmatpush.msra.mxu0 %v187
    %270 = vmatpush.msra.mxu0 %v186
    %271 = vmatpush.msra.mxu0 %v185
    %272 = vmatmul.f32.gmra.mxu0 %v254
    %v273 = vpop.f32.mrf.mxu0
    %v274 = vadd.f32 0.0, %v273
    %275 = vdwg.mxu0
    %v276 = vadd.f32 %v165, %v274
    %v277 = vxor.u32 %v276, 2147483648
    %v278 = vmul.f32 %v277, 1.442695
    %v279 = vpow.pop %v278
    %v280 = vadd.f32 %v279, 1.0
    %v281 = vrcp.pop %v280
    %v282 = vmul.f32 %v280, %v281
    %v283 = vsub.f32 1.0, %v282
    %v284 = vmul.f32 %v281, %v283
    %v285 = vadd.f32 %v281, %v284
    %vm286 = vweird.f32 %v280
    %vm287 = vweird.f32 %v281
    %vm288 = vmor %vm286, %vm287
    %v289 = vsel %vm288, %v281, %v285
    %v290 = vand.u32 2147483647, %v280
    %vm291 = vcmp.eq.f32.partialorder %v290, 8.507059e+37
    %v292 = vand.u32 %v280, 2147483648
    %v293 = vor.u32 1.1754944e-38, %v292
    %v294 = vsel %vm291, %v293, %v289
    %v295 = vmul.f32 1.0, %v294
    %v296 = vtanh.pop %v276
    %v297 = vmul.f32 %v295, %v244
    %299 = vrot.lane.b32.xlu0 %v296, 64
    %v300 = vpop.permute.xlu0 %299
    %v302 = vmul.f32 %v295, %v300
    %304 = vrot.lane.b32.xlu0 %v302, 32
    %v305 = vpop.permute.xlu0 %304
    %v307 = vadd.f32 %v297, %v305
    %v308 = vtanh.pop %v307
    %310 = vrot.lane.b32.xlu0 %v308, 64
    %v311 = vpop.permute.xlu0 %310
    %v313 = vmul.f32 %v295, %v311
    %315 = vrot.lane.b32.xlu0 %v313, 32
    %v316 = vpop.permute.xlu0 %315
    %v317 = vsel %vm189, %v316, 0
    %319 = vmatpush.msra.mxu0 0.0
    %320 = vmatpush.msra.mxu0 0.0
    %321 = vmatpush.msra.mxu0 0.0
    %322 = vmatpush.msra.mxu0 0.0
    %323 = vmatpush.msra.mxu0 0.0
    %324 = vmatpush.msra.mxu0 0.0
    %325 = vmatpush.msra.mxu0 0.0
    %326 = vmatpush.msra.mxu0 0.0
    %327 = vmatpush.msra.mxu0 0.0
    %328 = vmatpush.msra.mxu0 0.0
    %329 = vmatpush.msra.mxu0 0.0
    %330 = vmatpush.msra.mxu0 0.0
    %331 = vmatpush.msra.mxu0 %v188
    %332 = vmatpush.msra.mxu0 %v187
    %333 = vmatpush.msra.mxu0 %v186
    %334 = vmatpush.msra.mxu0 %v185
    %335 = vmatmul.f32.gmra.mxu0 %v317
    %v336 = vpop.f32.mrf.mxu0
    %v337 = vadd.f32 0.0, %v336
    %338 = vdwg.mxu0
    %v339 = vadd.f32 %v168, %v337
    %v340 = vxor.u32 %v339, 2147483648
    %v341 = vmul.f32 %v340, 1.442695
    %v342 = vpow.pop %v341
    %v343 = vadd.f32 %v342, 1.0
    %v344 = vrcp.pop %v343
    %v345 = vmul.f32 %v343, %v344
    %v346 = vsub.f32 1.0, %v345
    %v347 = vmul.f32 %v344, %v346
    %v348 = vadd.f32 %v344, %v347
    %vm349 = vweird.f32 %v343
    %vm350 = vweird.f32 %v344
    %vm351 = vmor %vm349, %vm350
    %v352 = vsel %vm351, %v344, %v348
    %v353 = vand.u32 2147483647, %v343
    %vm354 = vcmp.eq.f32.partialorder %v353, 8.507059e+37
    %v355 = vand.u32 %v343, 2147483648
    %v356 = vor.u32 1.1754944e-38, %v355
    %v357 = vsel %vm354, %v356, %v352
    %v358 = vmul.f32 1.0, %v357
    %v359 = vtanh.pop %v339
    %v360 = vmul.f32 %v358, %v307
    %362 = vrot.lane.b32.xlu0 %v359, 64
    %v363 = vpop.permute.xlu0 %362
    %v365 = vmul.f32 %v358, %v363
    %367 = vrot.lane.b32.xlu0 %v365, 32
    %v368 = vpop.permute.xlu0 %367
    %v370 = vadd.f32 %v360, %v368
    %v371 = vtanh.pop %v370
    %373 = vrot.lane.b32.xlu0 %v371, 64
    %v374 = vpop.permute.xlu0 %373
    %v376 = vmul.f32 %v358, %v374
    %378 = vrot.lane.b32.xlu0 %v376, 32
    %v379 = vpop.permute.xlu0 %378
    %v380 = vsel %vm189, %v379, 0
    %382 = vmatpush.msra.mxu0 0.0
    %383 = vmatpush.msra.mxu0 0.0
    %384 = vmatpush.msra.mxu0 0.0
    %385 = vmatpush.msra.mxu0 0.0
    %386 = vmatpush.msra.mxu0 0.0
    %387 = vmatpush.msra.mxu0 0.0
    %388 = vmatpush.msra.mxu0 0.0
    %389 = vmatpush.msra.mxu0 0.0
    %390 = vmatpush.msra.mxu0 0.0
    %391 = vmatpush.msra.mxu0 0.0
    %392 = vmatpush.msra.mxu0 0.0
    %393 = vmatpush.msra.mxu0 0.0
    %394 = vmatpush.msra.mxu0 %v188
    %395 = vmatpush.msra.mxu0 %v187
    %396 = vmatpush.msra.mxu0 %v186
    %397 = vmatpush.msra.mxu0 %v185
    %398 = vmatmul.f32.gmra.mxu0 %v380
    %v399 = vpop.f32.mrf.mxu0
    %v400 = vadd.f32 0.0, %v399
    %401 = vdwg.mxu0
    %v402 = vadd.f32 %v171, %v400
    %v403 = vxor.u32 %v402, 2147483648
    %v404 = vmul.f32 %v403, 1.442695
    %v405 = vpow.pop %v404
    %v406 = vadd.f32 %v405, 1.0
    %v407 = vrcp.pop %v406
    %v408 = vmul.f32 %v406, %v407
    %v409 = vsub.f32 1.0, %v408
    %v410 = vmul.f32 %v407, %v409
    %v411 = vadd.f32 %v407, %v410
    %vm412 = vweird.f32 %v406
    %vm413 = vweird.f32 %v407
    %vm414 = vmor %vm412, %vm413
    %v415 = vsel %vm414, %v407, %v411
    %v416 = vand.u32 2147483647, %v406
    %vm417 = vcmp.eq.f32.partialorder %v416, 8.507059e+37
    %v418 = vand.u32 %v406, 2147483648
    %v419 = vor.u32 1.1754944e-38, %v418
    %v420 = vsel %vm417, %v419, %v415
    %v421 = vmul.f32 1.0, %v420
    %v422 = vtanh.pop %v402
    %v423 = vmul.f32 %v421, %v370
    %425 = vrot.lane.b32.xlu0 %v422, 64
    %v426 = vpop.permute.xlu0 %425
    %v428 = vmul.f32 %v421, %v426
    %430 = vrot.lane.b32.xlu0 %v428, 32
    %v431 = vpop.permute.xlu0 %430
    %v433 = vadd.f32 %v423, %v431
    %v434 = vtanh.pop %v433
    %436 = vrot.lane.b32.xlu0 %v434, 64
    %v437 = vpop.permute.xlu0 %436
    %v439 = vmul.f32 %v421, %v437
    %441 = vrot.lane.b32.xlu0 %v439, 32
    %v442 = vpop.permute.xlu0 %441
    %v443 = vsel %vm189, %v442, 0
    %445 = vmatpush.msra.mxu0 0.0
    %446 = vmatpush.msra.mxu0 0.0
    %447 = vmatpush.msra.mxu0 0.0
    %448 = vmatpush.msra.mxu0 0.0
    %449 = vmatpush.msra.mxu0 0.0
    %450 = vmatpush.msra.mxu0 0.0
    %451 = vmatpush.msra.mxu0 0.0
    %452 = vmatpush.msra.mxu0 0.0
    %453 = vmatpush.msra.mxu0 0.0
    %454 = vmatpush.msra.mxu0 0.0
    %455 = vmatpush.msra.mxu0 0.0
    %456 = vmatpush.msra.mxu0 0.0
    %457 = vmatpush.msra.mxu0 %v188
    %458 = vmatpush.msra.mxu0 %v187
    %459 = vmatpush.msra.mxu0 %v186
    %460 = vmatpush.msra.mxu0 %v185
    %461 = vmatmul.f32.gmra.mxu0 %v443
    %v462 = vpop.f32.mrf.mxu0
    %v463 = vadd.f32 0.0, %v462
    %464 = vdwg.mxu0
    %v465 = vadd.f32 %v174, %v463
    %v466 = vxor.u32 %v465, 2147483648
    %v467 = vmul.f32 %v466, 1.442695
    %v468 = vpow.pop %v467
    %v469 = vadd.f32 %v468, 1.0
    %v470 = vrcp.pop %v469
    %v471 = vmul.f32 %v469, %v470
    %v472 = vsub.f32 1.0, %v471
    %v473 = vmul.f32 %v470, %v472
    %v474 = vadd.f32 %v470, %v473
    %vm475 = vweird.f32 %v469
    %vm476 = vweird.f32 %v470
    %vm477 = vmor %vm475, %vm476
    %v478 = vsel %vm477, %v470, %v474
    %v479 = vand.u32 2147483647, %v469
    %vm480 = vcmp.eq.f32.partialorder %v479, 8.507059e+37
    %v481 = vand.u32 %v469, 2147483648
    %v482 = vor.u32 1.1754944e-38, %v481
    %v483 = vsel %vm480, %v482, %v478
    %v484 = vmul.f32 1.0, %v483
    %v485 = vtanh.pop %v465
    %v486 = vmul.f32 %v484, %v433
    %488 = vrot.lane.b32.xlu0 %v485, 64
    %v489 = vpop.permute.xlu0 %488
    %v491 = vmul.f32 %v484, %v489
    %493 = vrot.lane.b32.xlu0 %v491, 32
    %v494 = vpop.permute.xlu0 %493
    %v496 = vadd.f32 %v486, %v494
    %v497 = vtanh.pop %v496
    %499 = vrot.lane.b32.xlu0 %v497, 64
    %v500 = vpop.permute.xlu0 %499
    %v502 = vmul.f32 %v484, %v500
    %504 = vrot.lane.b32.xlu0 %v502, 32
    %v505 = vpop.permute.xlu0 %504
    %v506 = vsel %vm189, %v505, 0
    %508 = vmatpush.msra.mxu0 0.0
    %509 = vmatpush.msra.mxu0 0.0
    %510 = vmatpush.msra.mxu0 0.0
    %511 = vmatpush.msra.mxu0 0.0
    %512 = vmatpush.msra.mxu0 0.0
    %513 = vmatpush.msra.mxu0 0.0
    %514 = vmatpush.msra.mxu0 0.0
    %515 = vmatpush.msra.mxu0 0.0
    %516 = vmatpush.msra.mxu0 0.0
    %517 = vmatpush.msra.mxu0 0.0
    %518 = vmatpush.msra.mxu0 0.0
    %519 = vmatpush.msra.mxu0 0.0
    %520 = vmatpush.msra.mxu0 %v188
    %521 = vmatpush.msra.mxu0 %v187
    %522 = vmatpush.msra.mxu0 %v186
    %523 = vmatpush.msra.mxu0 %v185
    %524 = vmatmul.f32.gmra.mxu0 %v506
    %v525 = vpop.f32.mrf.mxu0
    %v526 = vadd.f32 0.0, %v525
    %527 = vdwg.mxu0
    %v528 = vadd.f32 %v177, %v526
    %v529 = vxor.u32 %v528, 2147483648
    %v530 = vmul.f32 %v529, 1.442695
    %v531 = vpow.pop %v530
    %v532 = vadd.f32 %v531, 1.0
    %v533 = vrcp.pop %v532
    %v534 = vmul.f32 %v532, %v533
    %v535 = vsub.f32 1.0, %v534
    %v536 = vmul.f32 %v533, %v535
    %v537 = vadd.f32 %v533, %v536
    %vm538 = vweird.f32 %v532
    %vm539 = vweird.f32 %v533
    %vm540 = vmor %vm538, %vm539
    %v541 = vsel %vm540, %v533, %v537
    %v542 = vand.u32 2147483647, %v532
    %vm543 = vcmp.eq.f32.partialorder %v542, 8.507059e+37
    %v544 = vand.u32 %v532, 2147483648
    %v545 = vor.u32 1.1754944e-38, %v544
    %v546 = vsel %vm543, %v545, %v541
    %v547 = vmul.f32 1.0, %v546
    %v548 = vtanh.pop %v528
    %v549 = vmul.f32 %v547, %v496
    %551 = vrot.lane.b32.xlu0 %v548, 64
    %v552 = vpop.permute.xlu0 %551
    %v554 = vmul.f32 %v547, %v552
    %556 = vrot.lane.b32.xlu0 %v554, 32
    %v557 = vpop.permute.xlu0 %556
    %v559 = vadd.f32 %v549, %v557
    %v560 = vtanh.pop %v559
    %562 = vrot.lane.b32.xlu0 %v560, 64
    %v563 = vpop.permute.xlu0 %562
    %v565 = vmul.f32 %v547, %v563
    %567 = vrot.lane.b32.xlu0 %v565, 32
    %v568 = vpop.permute.xlu0 %567
    %v569 = vsel %vm189, %v568, 0
    %571 = vmatpush.msra.mxu0 0.0
    %572 = vmatpush.msra.mxu0 0.0
    %573 = vmatpush.msra.mxu0 0.0
    %574 = vmatpush.msra.mxu0 0.0
    %575 = vmatpush.msra.mxu0 0.0
    %576 = vmatpush.msra.mxu0 0.0
    %577 = vmatpush.msra.mxu0 0.0
    %578 = vmatpush.msra.mxu0 0.0
    %579 = vmatpush.msra.mxu0 0.0
    %580 = vmatpush.msra.mxu0 0.0
    %581 = vmatpush.msra.mxu0 0.0
    %582 = vmatpush.msra.mxu0 0.0
    %583 = vmatpush.msra.mxu0 %v188
    %584 = vmatpush.msra.mxu0 %v187
    %585 = vmatpush.msra.mxu0 %v186
    %586 = vmatpush.msra.mxu0 %v185
    %587 = vmatmul.f32.gmra.mxu0 %v569
    %v588 = vpop.f32.mrf.mxu0
    %v589 = vadd.f32 0.0, %v588
    %590 = vdwg.mxu0
    %v591 = vadd.f32 %v180, %v589
    %v592 = vxor.u32 %v591, 2147483648
    %v593 = vmul.f32 %v592, 1.442695
    %v594 = vpow.pop %v593
    %v595 = vadd.f32 %v594, 1.0
    %v596 = vrcp.pop %v595
    %v597 = vmul.f32 %v595, %v596
    %v598 = vsub.f32 1.0, %v597
    %v599 = vmul.f32 %v596, %v598
    %v600 = vadd.f32 %v596, %v599
    %vm601 = vweird.f32 %v595
    %vm602 = vweird.f32 %v596
    %vm603 = vmor %vm601, %vm602
    %v604 = vsel %vm603, %v596, %v600
    %v605 = vand.u32 2147483647, %v595
    %vm606 = vcmp.eq.f32.partialorder %v605, 8.507059e+37
    %v607 = vand.u32 %v595, 2147483648
    %v608 = vor.u32 1.1754944e-38, %v607
    %v609 = vsel %vm606, %v608, %v604
    %v610 = vmul.f32 1.0, %v609
    %v611 = vtanh.pop %v591
    %v612 = vmul.f32 %v610, %v559
    %614 = vrot.lane.b32.xlu0 %v611, 64
    %v615 = vpop.permute.xlu0 %614
    %v617 = vmul.f32 %v610, %v615
    %619 = vrot.lane.b32.xlu0 %v617, 32
    %v620 = vpop.permute.xlu0 %619
    %v622 = vadd.f32 %v612, %v620
    %v623 = vtanh.pop %v622
    %625 = vrot.lane.b32.xlu0 %v623, 64
    %v626 = vpop.permute.xlu0 %625
    %v628 = vmul.f32 %v610, %v626
    %630 = vrot.lane.b32.xlu0 %v628, 32
    %v631 = vpop.permute.xlu0 %630
    %v632 = vsel %vm189, %v631, 0
    %634 = vmatpush.msra.mxu0 0.0
    %635 = vmatpush.msra.mxu0 0.0
    %636 = vmatpush.msra.mxu0 0.0
    %637 = vmatpush.msra.mxu0 0.0
    %638 = vmatpush.msra.mxu0 0.0
    %639 = vmatpush.msra.mxu0 0.0
    %640 = vmatpush.msra.mxu0 0.0
    %641 = vmatpush.msra.mxu0 0.0
    %642 = vmatpush.msra.mxu0 0.0
    %643 = vmatpush.msra.mxu0 0.0
    %644 = vmatpush.msra.mxu0 0.0
    %645 = vmatpush.msra.mxu0 0.0
    %646 = vmatpush.msra.mxu0 %v188
    %647 = vmatpush.msra.mxu0 %v187
    %648 = vmatpush.msra.mxu0 %v186
    %649 = vmatpush.msra.mxu0 %v185
    %650 = vmatmul.f32.gmra.mxu0 %v632
    %v651 = vpop.f32.mrf.mxu0
    %v652 = vadd.f32 0.0, %v651
    %653 = vdwg.mxu0
    %v654 = vadd.f32 %v183, %v652
    %v655 = vxor.u32 %v654, 2147483648
    %v656 = vmul.f32 %v655, 1.442695
    %v657 = vpow.pop %v656
    %v658 = vadd.f32 %v657, 1.0
    %v659 = vrcp.pop %v658
    %v660 = vmul.f32 %v658, %v659
    %v661 = vsub.f32 1.0, %v660
    %v662 = vmul.f32 %v659, %v661
    %v663 = vadd.f32 %v659, %v662
    %vm664 = vweird.f32 %v658
    %vm665 = vweird.f32 %v659
    %vm666 = vmor %vm664, %vm665
    %v667 = vsel %vm666, %v659, %v663
    %v668 = vand.u32 2147483647, %v658
    %vm669 = vcmp.eq.f32.partialorder %v668, 8.507059e+37
    %v670 = vand.u32 %v658, 2147483648
    %v671 = vor.u32 1.1754944e-38, %v670
    %v672 = vsel %vm669, %v671, %v667
    %v673 = vmul.f32 1.0, %v672
    %v674 = vtanh.pop %v654
    %v675 = vmul.f32 %v673, %v622
    %677 = vrot.lane.b32.xlu0 %v674, 64
    %v678 = vpop.permute.xlu0 %677
    %v680 = vmul.f32 %v673, %v678
    %682 = vrot.lane.b32.xlu0 %v680, 32
    %v683 = vpop.permute.xlu0 %682
    %v685 = vadd.f32 %v675, %v683
    %v686 = vtanh.pop %v685
    %688 = vrot.lane.b32.xlu0 %v686, 64
    %v689 = vpop.permute.xlu0 %688
    %v691 = vmul.f32 %v673, %v689
    %v692 = vld [vmem:[#allocation8] sm:$0xff]
    %v693 = vld [vmem:[#allocation8 + $0x8] sm:$0xff]
    %v694 = vld [vmem:[#allocation8 + $0x10] sm:$0xff]
    %v695 = vld [vmem:[#allocation8 + $0x18] sm:$0xff]
    %v696 = vld [vmem:[%s6] sm:$0x1]
    %v698 = vperm.slane %v696, 0
    %701 = vrot.lane.b32.xlu0 %v691, 32
    %v702 = vpop.permute.xlu0 %701
    %v703 = vsel %vm189, %v702, 0
    %705 = vmatpush.msra.mxu0 0.0
    %706 = vmatpush.msra.mxu0 0.0
    %707 = vmatpush.msra.mxu0 0.0
    %708 = vmatpush.msra.mxu0 0.0
    %709 = vmatpush.msra.mxu0 0.0
    %710 = vmatpush.msra.mxu0 0.0
    %711 = vmatpush.msra.mxu0 0.0
    %712 = vmatpush.msra.mxu0 0.0
    %713 = vmatpush.msra.mxu0 0.0
    %714 = vmatpush.msra.mxu0 0.0
    %715 = vmatpush.msra.mxu0 0.0
    %716 = vmatpush.msra.mxu0 0.0
    %717 = vmatpush.msra.mxu0 %v695
    %718 = vmatpush.msra.mxu0 %v694
    %719 = vmatpush.msra.mxu0 %v693
    %720 = vmatpush.msra.mxu0 %v692
    %721 = vmatmul.f32.gmra.mxu0 %v703
    %v722 = vpop.f32.mrf.mxu0
    %v723 = vadd.f32 %v698, %v722
    %724 = vdwg.mxu0
    %v725 = vld [vmem:[#allocation10] sm:$0xff]
    %v726 = vld [vmem:[#allocation10 + $0x8] sm:$0xff]
    %v727 = vsel %vm119, 0.0, 0
    %729 = vmatpush.msra.mxu0 0.0
    %730 = vmatpush.msra.mxu0 0.0
    %731 = vmatpush.msra.mxu0 0.0
    %732 = vmatpush.msra.mxu0 0.0
    %733 = vmatpush.msra.mxu0 0.0
    %734 = vmatpush.msra.mxu0 0.0
    %735 = vmatpush.msra.mxu0 0.0
    %736 = vmatpush.msra.mxu0 0.0
    %737 = vmatpush.msra.mxu0 0.0
    %738 = vmatpush.msra.mxu0 0.0
    %739 = vmatpush.msra.mxu0 0.0
    %740 = vmatpush.msra.mxu0 0.0
    %741 = vmatpush.msra.mxu0 0.0
    %742 = vmatpush.msra.mxu0 0.0
    %743 = vmatpush.msra.mxu0 %v726
    %744 = vmatpush.msra.mxu0 %v725
    %745 = vmatmul.f32.gmra.mxu0 %v727
    %v746 = vpop.f32.mrf.mxu0
    %v747 = vadd.f32 0.0, %v746
    %748 = vdwg.mxu0
    %v749 = vadd.f32 %v723, %v747
    %v750 = vxor.u32 %v749, 2147483648
    %v751 = vmul.f32 %v750, 1.442695
    %v752 = vpow.pop %v751
    %v753 = vadd.f32 %v752, 1.0
    %v754 = vrcp.pop %v753
    %v755 = vmul.f32 %v753, %v754
    %v756 = vsub.f32 1.0, %v755
    %v757 = vmul.f32 %v754, %v756
    %v758 = vadd.f32 %v754, %v757
    %vm759 = vweird.f32 %v753
    %vm760 = vweird.f32 %v754
    %vm761 = vmor %vm759, %vm760
    %v762 = vsel %vm761, %v754, %v758
    %v763 = vand.u32 2147483647, %v753
    %vm764 = vcmp.eq.f32.partialorder %v763, 8.507059e+37
    %v765 = vand.u32 %v753, 2147483648
    %v766 = vor.u32 1.1754944e-38, %v765
    %v767 = vsel %vm764, %v766, %v762
    %v768 = vmul.f32 1.0, %v767
    %v769 = vtanh.pop %v749
    %v770 = vmul.f32 %v768, 0.0
    %772 = vrot.lane.b32.xlu0 %v769, 96
    %v773 = vpop.permute.xlu0 %772
    %v775 = vmul.f32 %v768, %v773
    %777 = vrot.lane.b32.xlu0 %v775, 16
    %v778 = vpop.permute.xlu0 %777
    %v780 = vadd.f32 %v770, %v778
    %v781 = vtanh.pop %v780
    %783 = vrot.lane.b32.xlu0 %v781, 32
    %v784 = vpop.permute.xlu0 %783
    %v786 = vmul.f32 %v768, %v784
    %788 = vrot.lane.b32.xlu0 %v786, 80
    %v789 = vpop.permute.xlu0 %788
    %v790 = vsel %vm119, %v789, 0
    %792 = vmatpush.msra.mxu0 0.0
    %793 = vmatpush.msra.mxu0 0.0
    %794 = vmatpush.msra.mxu0 0.0
    %795 = vmatpush.msra.mxu0 0.0
    %796 = vmatpush.msra.mxu0 0.0
    %797 = vmatpush.msra.mxu0 0.0
    %798 = vmatpush.msra.mxu0 0.0
    %799 = vmatpush.msra.mxu0 0.0
    %800 = vmatpush.msra.mxu0 0.0
    %801 = vmatpush.msra.mxu0 0.0
    %802 = vmatpush.msra.mxu0 0.0
    %803 = vmatpush.msra.mxu0 0.0
    %804 = vmatpush.msra.mxu0 0.0
    %805 = vmatpush.msra.mxu0 0.0
    %806 = vmatpush.msra.mxu0 %v726
    %807 = vmatpush.msra.mxu0 %v725
    %808 = vmatmul.f32.gmra.mxu0 %v790
    %v809 = vpop.f32.mrf.mxu0
    %v810 = vadd.f32 0.0, %v809
    %811 = vdwg.mxu0
    %v812 = vadd.f32 %v723, %v810
    %v813 = vxor.u32 %v812, 2147483648
    %v814 = vmul.f32 %v813, 1.442695
    %v815 = vpow.pop %v814
    %v816 = vadd.f32 %v815, 1.0
    %v817 = vrcp.pop %v816
    %v818 = vmul.f32 %v816, %v817
    %v819 = vsub.f32 1.0, %v818
    %v820 = vmul.f32 %v817, %v819
    %v821 = vadd.f32 %v817, %v820
    %vm822 = vweird.f32 %v816
    %vm823 = vweird.f32 %v817
    %vm824 = vmor %vm822, %vm823
    %v825 = vsel %vm824, %v817, %v821
    %v826 = vand.u32 2147483647, %v816
    %vm827 = vcmp.eq.f32.partialorder %v826, 8.507059e+37
    %v828 = vand.u32 %v816, 2147483648
    %v829 = vor.u32 1.1754944e-38, %v828
    %v830 = vsel %vm827, %v829, %v825
    %v831 = vmul.f32 1.0, %v830
    %v832 = vtanh.pop %v812
    %v833 = vmul.f32 %v831, %v780
    %835 = vrot.lane.b32.xlu0 %v832, 96
    %v836 = vpop.permute.xlu0 %835
    %v838 = vmul.f32 %v831, %v836
    %840 = vrot.lane.b32.xlu0 %v838, 16
    %v841 = vpop.permute.xlu0 %840
    %v843 = vadd.f32 %v833, %v841
    %v844 = vtanh.pop %v843
    %846 = vrot.lane.b32.xlu0 %v844, 32
    %v847 = vpop.permute.xlu0 %846
    %v849 = vmul.f32 %v831, %v847
    %851 = vrot.lane.b32.xlu0 %v849, 80
    %v852 = vpop.permute.xlu0 %851
    %v853 = vsel %vm119, %v852, 0
    %855 = vmatpush.msra.mxu0 0.0
    %856 = vmatpush.msra.mxu0 0.0
    %857 = vmatpush.msra.mxu0 0.0
    %858 = vmatpush.msra.mxu0 0.0
    %859 = vmatpush.msra.mxu0 0.0
    %860 = vmatpush.msra.mxu0 0.0
    %861 = vmatpush.msra.mxu0 0.0
    %862 = vmatpush.msra.mxu0 0.0
    %863 = vmatpush.msra.mxu0 0.0
    %864 = vmatpush.msra.mxu0 0.0
    %865 = vmatpush.msra.mxu0 0.0
    %866 = vmatpush.msra.mxu0 0.0
    %867 = vmatpush.msra.mxu0 0.0
    %868 = vmatpush.msra.mxu0 0.0
    %869 = vmatpush.msra.mxu0 %v726
    %870 = vmatpush.msra.mxu0 %v725
    %871 = vmatmul.f32.gmra.mxu0 %v853
    %v872 = vpop.f32.mrf.mxu0
    %v873 = vadd.f32 0.0, %v872
    %874 = vdwg.mxu0
    %v875 = vadd.f32 %v723, %v873
    %v876 = vxor.u32 %v875, 2147483648
    %v877 = vmul.f32 %v876, 1.442695
    %v878 = vpow.pop %v877
    %v879 = vadd.f32 %v878, 1.0
    %v880 = vrcp.pop %v879
    %v881 = vmul.f32 %v879, %v880
    %v882 = vsub.f32 1.0, %v881
    %v883 = vmul.f32 %v880, %v882
    %v884 = vadd.f32 %v880, %v883
    %vm885 = vweird.f32 %v879
    %vm886 = vweird.f32 %v880
    %vm887 = vmor %vm885, %vm886
    %v888 = vsel %vm887, %v880, %v884
    %v889 = vand.u32 2147483647, %v879
    %vm890 = vcmp.eq.f32.partialorder %v889, 8.507059e+37
    %v891 = vand.u32 %v879, 2147483648
    %v892 = vor.u32 1.1754944e-38, %v891
    %v893 = vsel %vm890, %v892, %v888
    %v894 = vmul.f32 1.0, %v893
    %v895 = vtanh.pop %v875
    %v896 = vmul.f32 %v894, %v843
    %898 = vrot.lane.b32.xlu0 %v895, 96
    %v899 = vpop.permute.xlu0 %898
    %v901 = vmul.f32 %v894, %v899
    %903 = vrot.lane.b32.xlu0 %v901, 16
    %v904 = vpop.permute.xlu0 %903
    %v906 = vadd.f32 %v896, %v904
    %v907 = vtanh.pop %v906
    %909 = vrot.lane.b32.xlu0 %v907, 32
    %v910 = vpop.permute.xlu0 %909
    %v912 = vmul.f32 %v894, %v910
    %914 = vrot.lane.b32.xlu0 %v912, 80
    %v915 = vpop.permute.xlu0 %914
    %v916 = vsel %vm119, %v915, 0
    %918 = vmatpush.msra.mxu0 0.0
    %919 = vmatpush.msra.mxu0 0.0
    %920 = vmatpush.msra.mxu0 0.0
    %921 = vmatpush.msra.mxu0 0.0
    %922 = vmatpush.msra.mxu0 0.0
    %923 = vmatpush.msra.mxu0 0.0
    %924 = vmatpush.msra.mxu0 0.0
    %925 = vmatpush.msra.mxu0 0.0
    %926 = vmatpush.msra.mxu0 0.0
    %927 = vmatpush.msra.mxu0 0.0
    %928 = vmatpush.msra.mxu0 0.0
    %929 = vmatpush.msra.mxu0 0.0
    %930 = vmatpush.msra.mxu0 0.0
    %931 = vmatpush.msra.mxu0 0.0
    %932 = vmatpush.msra.mxu0 %v726
    %933 = vmatpush.msra.mxu0 %v725
    %934 = vmatmul.f32.gmra.mxu0 %v916
    %v935 = vpop.f32.mrf.mxu0
    %v936 = vadd.f32 0.0, %v935
    %937 = vdwg.mxu0
    %v938 = vadd.f32 %v723, %v936
    %v939 = vxor.u32 %v938, 2147483648
    %v940 = vmul.f32 %v939, 1.442695
    %v941 = vpow.pop %v940
    %v942 = vadd.f32 %v941, 1.0
    %v943 = vrcp.pop %v942
    %v944 = vmul.f32 %v942, %v943
    %v945 = vsub.f32 1.0, %v944
    %v946 = vmul.f32 %v943, %v945
    %v947 = vadd.f32 %v943, %v946
    %vm948 = vweird.f32 %v942
    %vm949 = vweird.f32 %v943
    %vm950 = vmor %vm948, %vm949
    %v951 = vsel %vm950, %v943, %v947
    %v952 = vand.u32 2147483647, %v942
    %vm953 = vcmp.eq.f32.partialorder %v952, 8.507059e+37
    %v954 = vand.u32 %v942, 2147483648
    %v955 = vor.u32 1.1754944e-38, %v954
    %v956 = vsel %vm953, %v955, %v951
    %v957 = vmul.f32 1.0, %v956
    %v958 = vtanh.pop %v938
    %v959 = vmul.f32 %v957, %v906
    %961 = vrot.lane.b32.xlu0 %v958, 96
    %v962 = vpop.permute.xlu0 %961
    %v964 = vmul.f32 %v957, %v962
    %966 = vrot.lane.b32.xlu0 %v964, 16
    %v967 = vpop.permute.xlu0 %966
    %v969 = vadd.f32 %v959, %v967
    %v970 = vtanh.pop %v969
    %972 = vrot.lane.b32.xlu0 %v970, 32
    %v973 = vpop.permute.xlu0 %972
    %v975 = vmul.f32 %v957, %v973
    %977 = vrot.lane.b32.xlu0 %v975, 80
    %v978 = vpop.permute.xlu0 %977
    %v979 = vsel %vm119, %v978, 0
    %981 = vmatpush.msra.mxu0 0.0
    %982 = vmatpush.msra.mxu0 0.0
    %983 = vmatpush.msra.mxu0 0.0
    %984 = vmatpush.msra.mxu0 0.0
    %985 = vmatpush.msra.mxu0 0.0
    %986 = vmatpush.msra.mxu0 0.0
    %987 = vmatpush.msra.mxu0 0.0
    %988 = vmatpush.msra.mxu0 0.0
    %989 = vmatpush.msra.mxu0 0.0
    %990 = vmatpush.msra.mxu0 0.0
    %991 = vmatpush.msra.mxu0 0.0
    %992 = vmatpush.msra.mxu0 0.0
    %993 = vmatpush.msra.mxu0 0.0
    %994 = vmatpush.msra.mxu0 0.0
    %995 = vmatpush.msra.mxu0 %v726
    %996 = vmatpush.msra.mxu0 %v725
    %997 = vmatmul.f32.gmra.mxu0 %v979
    %v998 = vpop.f32.mrf.mxu0
    %v999 = vadd.f32 0.0, %v998
    %1000 = vdwg.mxu0
    %v1001 = vadd.f32 %v723, %v999
    %v1002 = vxor.u32 %v1001, 2147483648
    %v1003 = vmul.f32 %v1002, 1.442695
    %v1004 = vpow.pop %v1003
    %v1005 = vadd.f32 %v1004, 1.0
    %v1006 = vrcp.pop %v1005
    %v1007 = vmul.f32 %v1005, %v1006
    %v1008 = vsub.f32 1.0, %v1007
    %v1009 = vmul.f32 %v1006, %v1008
    %v1010 = vadd.f32 %v1006, %v1009
    %vm1011 = vweird.f32 %v1005
    %vm1012 = vweird.f32 %v1006
    %vm1013 = vmor %vm1011, %vm1012
    %v1014 = vsel %vm1013, %v1006, %v1010
    %v1015 = vand.u32 2147483647, %v1005
    %vm1016 = vcmp.eq.f32.partialorder %v1015, 8.507059e+37
    %v1017 = vand.u32 %v1005, 2147483648
    %v1018 = vor.u32 1.1754944e-38, %v1017
    %v1019 = vsel %vm1016, %v1018, %v1014
    %v1020 = vmul.f32 1.0, %v1019
    %v1021 = vtanh.pop %v1001
    %v1022 = vmul.f32 %v1020, %v969
    %1024 = vrot.lane.b32.xlu0 %v1021, 96
    %v1025 = vpop.permute.xlu0 %1024
    %v1027 = vmul.f32 %v1020, %v1025
    %1029 = vrot.lane.b32.xlu0 %v1027, 16
    %v1030 = vpop.permute.xlu0 %1029
    %v1032 = vadd.f32 %v1022, %v1030
    %v1033 = vtanh.pop %v1032
    %1035 = vrot.lane.b32.xlu0 %v1033, 32
    %v1036 = vpop.permute.xlu0 %1035
    %v1038 = vmul.f32 %v1020, %v1036
    %1040 = vrot.lane.b32.xlu0 %v1038, 80
    %v1041 = vpop.permute.xlu0 %1040
    %v1042 = vsel %vm119, %v1041, 0
    %1044 = vmatpush.msra.mxu0 0.0
    %1045 = vmatpush.msra.mxu0 0.0
    %1046 = vmatpush.msra.mxu0 0.0
    %1047 = vmatpush.msra.mxu0 0.0
    %1048 = vmatpush.msra.mxu0 0.0
    %1049 = vmatpush.msra.mxu0 0.0
    %1050 = vmatpush.msra.mxu0 0.0
    %1051 = vmatpush.msra.mxu0 0.0
    %1052 = vmatpush.msra.mxu0 0.0
    %1053 = vmatpush.msra.mxu0 0.0
    %1054 = vmatpush.msra.mxu0 0.0
    %1055 = vmatpush.msra.mxu0 0.0
    %1056 = vmatpush.msra.mxu0 0.0
    %1057 = vmatpush.msra.mxu0 0.0
    %1058 = vmatpush.msra.mxu0 %v726
    %1059 = vmatpush.msra.mxu0 %v725
    %1060 = vmatmul.f32.gmra.mxu0 %v1042
    %v1061 = vpop.f32.mrf.mxu0
    %v1062 = vadd.f32 0.0, %v1061
    %1063 = vdwg.mxu0
    %v1064 = vadd.f32 %v723, %v1062
    %v1065 = vxor.u32 %v1064, 2147483648
    %v1066 = vmul.f32 %v1065, 1.442695
    %v1067 = vpow.pop %v1066
    %v1068 = vadd.f32 %v1067, 1.0
    %v1069 = vrcp.pop %v1068
    %v1070 = vmul.f32 %v1068, %v1069
    %v1071 = vsub.f32 1.0, %v1070
    %v1072 = vmul.f32 %v1069, %v1071
    %v1073 = vadd.f32 %v1069, %v1072
    %vm1074 = vweird.f32 %v1068
    %vm1075 = vweird.f32 %v1069
    %vm1076 = vmor %vm1074, %vm1075
    %v1077 = vsel %vm1076, %v1069, %v1073
    %v1078 = vand.u32 2147483647, %v1068
    %vm1079 = vcmp.eq.f32.partialorder %v1078, 8.507059e+37
    %v1080 = vand.u32 %v1068, 2147483648
    %v1081 = vor.u32 1.1754944e-38, %v1080
    %v1082 = vsel %vm1079, %v1081, %v1077
    %v1083 = vmul.f32 1.0, %v1082
    %v1084 = vtanh.pop %v1064
    %v1085 = vmul.f32 %v1083, %v1032
    %1087 = vrot.lane.b32.xlu0 %v1084, 96
    %v1088 = vpop.permute.xlu0 %1087
    %v1090 = vmul.f32 %v1083, %v1088
    %1092 = vrot.lane.b32.xlu0 %v1090, 16
    %v1093 = vpop.permute.xlu0 %1092
    %v1095 = vadd.f32 %v1085, %v1093
    %v1096 = vtanh.pop %v1095
    %1098 = vrot.lane.b32.xlu0 %v1096, 32
    %v1099 = vpop.permute.xlu0 %1098
    %v1101 = vmul.f32 %v1083, %v1099
    %1103 = vrot.lane.b32.xlu0 %v1101, 80
    %v1104 = vpop.permute.xlu0 %1103
    %v1105 = vsel %vm119, %v1104, 0
    %1107 = vmatpush.msra.mxu0 0.0
    %1108 = vmatpush.msra.mxu0 0.0
    %1109 = vmatpush.msra.mxu0 0.0
    %1110 = vmatpush.msra.mxu0 0.0
    %1111 = vmatpush.msra.mxu0 0.0
    %1112 = vmatpush.msra.mxu0 0.0
    %1113 = vmatpush.msra.mxu0 0.0
    %1114 = vmatpush.msra.mxu0 0.0
    %1115 = vmatpush.msra.mxu0 0.0
    %1116 = vmatpush.msra.mxu0 0.0
    %1117 = vmatpush.msra.mxu0 0.0
    %1118 = vmatpush.msra.mxu0 0.0
    %1119 = vmatpush.msra.mxu0 0.0
    %1120 = vmatpush.msra.mxu0 0.0
    %1121 = vmatpush.msra.mxu0 %v726
    %1122 = vmatpush.msra.mxu0 %v725
    %1123 = vmatmul.f32.gmra.mxu0 %v1105
    %v1124 = vpop.f32.mrf.mxu0
    %v1125 = vadd.f32 0.0, %v1124
    %1126 = vdwg.mxu0
    %v1127 = vadd.f32 %v723, %v1125
    %v1128 = vxor.u32 %v1127, 2147483648
    %v1129 = vmul.f32 %v1128, 1.442695
    %v1130 = vpow.pop %v1129
    %v1131 = vadd.f32 %v1130, 1.0
    %v1132 = vrcp.pop %v1131
    %v1133 = vmul.f32 %v1131, %v1132
    %v1134 = vsub.f32 1.0, %v1133
    %v1135 = vmul.f32 %v1132, %v1134
    %v1136 = vadd.f32 %v1132, %v1135
    %vm1137 = vweird.f32 %v1131
    %vm1138 = vweird.f32 %v1132
    %vm1139 = vmor %vm1137, %vm1138
    %v1140 = vsel %vm1139, %v1132, %v1136
    %v1141 = vand.u32 2147483647, %v1131
    %vm1142 = vcmp.eq.f32.partialorder %v1141, 8.507059e+37
    %v1143 = vand.u32 %v1131, 2147483648
    %v1144 = vor.u32 1.1754944e-38, %v1143
    %v1145 = vsel %vm1142, %v1144, %v1140
    %v1146 = vmul.f32 1.0, %v1145
    %v1147 = vtanh.pop %v1127
    %v1148 = vmul.f32 %v1146, %v1095
    %1150 = vrot.lane.b32.xlu0 %v1147, 96
    %v1151 = vpop.permute.xlu0 %1150
    %v1153 = vmul.f32 %v1146, %v1151
    %1155 = vrot.lane.b32.xlu0 %v1153, 16
    %v1156 = vpop.permute.xlu0 %1155
    %v1158 = vadd.f32 %v1148, %v1156
    %v1159 = vtanh.pop %v1158
    %1161 = vrot.lane.b32.xlu0 %v1159, 32
    %v1162 = vpop.permute.xlu0 %1161
    %v1164 = vmul.f32 %v1146, %v1162
    %1166 = vrot.lane.b32.xlu0 %v1164, 80
    %v1167 = vpop.permute.xlu0 %1166
    %v1168 = vsel %vm119, %v1167, 0
    %1170 = vmatpush.msra.mxu0 0.0
    %1171 = vmatpush.msra.mxu0 0.0
    %1172 = vmatpush.msra.mxu0 0.0
    %1173 = vmatpush.msra.mxu0 0.0
    %1174 = vmatpush.msra.mxu0 0.0
    %1175 = vmatpush.msra.mxu0 0.0
    %1176 = vmatpush.msra.mxu0 0.0
    %1177 = vmatpush.msra.mxu0 0.0
    %1178 = vmatpush.msra.mxu0 0.0
    %1179 = vmatpush.msra.mxu0 0.0
    %1180 = vmatpush.msra.mxu0 0.0
    %1181 = vmatpush.msra.mxu0 0.0
    %1182 = vmatpush.msra.mxu0 0.0
    %1183 = vmatpush.msra.mxu0 0.0
    %1184 = vmatpush.msra.mxu0 %v726
    %1185 = vmatpush.msra.mxu0 %v725
    %1186 = vmatmul.f32.gmra.mxu0 %v1168
    %v1187 = vpop.f32.mrf.mxu0
    %v1188 = vadd.f32 0.0, %v1187
    %1189 = vdwg.mxu0
    %v1190 = vadd.f32 %v723, %v1188
    %v1191 = vxor.u32 %v1190, 2147483648
    %v1192 = vmul.f32 %v1191, 1.442695
    %v1193 = vpow.pop %v1192
    %v1194 = vadd.f32 %v1193, 1.0
    %v1195 = vrcp.pop %v1194
    %v1196 = vmul.f32 %v1194, %v1195
    %v1197 = vsub.f32 1.0, %v1196
    %v1198 = vmul.f32 %v1195, %v1197
    %v1199 = vadd.f32 %v1195, %v1198
    %vm1200 = vweird.f32 %v1194
    %vm1201 = vweird.f32 %v1195
    %vm1202 = vmor %vm1200, %vm1201
    %v1203 = vsel %vm1202, %v1195, %v1199
    %v1204 = vand.u32 2147483647, %v1194
    %vm1205 = vcmp.eq.f32.partialorder %v1204, 8.507059e+37
    %v1206 = vand.u32 %v1194, 2147483648
    %v1207 = vor.u32 1.1754944e-38, %v1206
    %v1208 = vsel %vm1205, %v1207, %v1203
    %v1209 = vmul.f32 1.0, %v1208
    %v1210 = vtanh.pop %v1190
    %v1211 = vmul.f32 %v1209, %v1158
    %1213 = vrot.lane.b32.xlu0 %v1210, 96
    %v1214 = vpop.permute.xlu0 %1213
    %v1216 = vmul.f32 %v1209, %v1214
    %1218 = vrot.lane.b32.xlu0 %v1216, 16
    %v1219 = vpop.permute.xlu0 %1218
    %v1221 = vadd.f32 %v1211, %v1219
    %v1222 = vtanh.pop %v1221
    %1224 = vrot.lane.b32.xlu0 %v1222, 32
    %v1225 = vpop.permute.xlu0 %1224
    %v1227 = vmul.f32 %v1209, %v1225
    %1229 = vrot.lane.b32.xlu0 %v849, 96
    %v1230 = vpop.permute.xlu0 %1229
    %1232 = vrot.lane.b32.xlu0 %v912, 112
    %v1233 = vpop.permute.xlu0 %1232
    %1235 = vrot.lane.b32.xlu0 %v1038, 16
    %v1236 = vpop.permute.xlu0 %1235
    %1238 = vrot.lane.b32.xlu0 %v1101, 32
    %v1239 = vpop.permute.xlu0 %1238
    %1241 = vrot.lane.b32.xlu0 %v1164, 48
    %v1242 = vpop.permute.xlu0 %1241
    %1245 = vrot.lane.b32.xlu0 %v1227, 64
    %v1246 = vpop.permute.xlu0 %1245
    %v1248 = vsel %vm119, %v789, %v1230
    %v1249 = vsel %vm189, %v1248, %v1233
    %vm1250 = vcmask 392192
    %v1251 = vsel %vm1250, %v1249, %v975
    %vm1252 = vcmask 523264
    %v1253 = vsel %vm1252, %v1251, %v1236
    %vm1254 = vcmask 654336
    %v1255 = vsel %vm1254, %v1253, %v1239
    %vm1256 = vcmask 785408
    %v1257 = vsel %vm1256, %v1255, %v1242
    %vm1258 = vcmask 916480
    %v1259 = vsel %vm1258, %v1257, %v1246
    %1260 = vst [vmem:[#allocation11] sm:$0xff] %v1259
    // Predicated region
    $region50: #{tpu_custom_call.1} parent=1 // pred_check
      _
    $region51: #{tpu_custom_call.1} parent=1 // pred_check_branch
      %1262 = sbr.rel (0) target = $region53
    $region52: #{tpu_custom_call.1} parent=1 // pred_region
      %1264 = vsyncadd [#allocation4], 0
      %s1266 = sshll.u32 [#allocation11], 4
      %s1267 = int_to_ptr.vmem [resolvable:$true] %s1266
      %s1268 = sshll.u32 %s7, 4
      %s1269 = int_to_ptr.hbm [resolvable:$true] %s1268
      %1271 = dma.vmem_to_hbm [thread:$0]  %s1267, 128, %s1269, [#allocation4]
    $region53: #{tpu_custom_call.1} parent=1 // pred_fallthru
      _
    // Predicated region
    $region54: #{tpu_custom_call.1} parent=1 // pred_check
      _
    $region55: #{tpu_custom_call.1} parent=1 // pred_check_branch
      %1273 = sbr.rel (0) target = $region57
    $region56: #{tpu_custom_call.1} parent=1 // pred_region
      %1275 = dma.done [#allocation4], 128
    $region57: #{tpu_custom_call.1} parent=1 // pred_fallthru
      _
    %1276 = vsyncpa [#allocation3], 1
    %1277 = vsyncpa [#allocation6], 1
    %1278 = vsyncpa [#allocation9], 1
    %1279 = vsyncpa [#allocation4], 1

</llo_original>
